<compile_context>
chip_gen: v7x
topology: tpu7x:2x2x1
jax: 0.10.0
libtpu: 0.0.40
codegen_flags: <defaults>
</compile_context>

<pallas_src>
import functools
import math

import numpy as np
import jax
import jax.numpy as jnp
from jax.experimental import pallas as pl
from jax.experimental.pallas import tpu as pltpu


# ----------------------------- filter construction (host-side glue) -----------------------------

def compute_dimensions(n: int):
    if n <= 2:
        raise ValueError("n must be greater than 2")
    T_prime = math.ceil(math.sqrt(n - 2)) ** 2 + 2
    sqrt_T_prime = math.ceil(math.sqrt(T_prime - 2))
    k_max = sqrt_T_prime
    return T_prime, sqrt_T_prime, k_max


def get_hankel(seq_len: int, use_hankel_L: bool = False) -> np.ndarray:
    entries = np.arange(1, seq_len + 1, dtype=np.float64)
    i_plus_j = entries[:, None] + entries[None, :]
    if use_hankel_L:
        sgn = (-1.0) ** (i_plus_j - 2.0) + 1.0
        denom = (i_plus_j + 3.0) * (i_plus_j - 1.0) * (i_plus_j + 1.0)
        Z = sgn * (8.0 / denom)
    else:
        Z = 2.0 / (i_plus_j ** 3 - i_plus_j)
    return Z


def get_tensorized_spectral_filters(n: int, k: int, use_hankel_L: bool = False) -> np.ndarray:
    _, sqrt_T_prime, k_max = compute_dimensions(n)
    k = min(k, k_max)
    Z = get_hankel(sqrt_T_prime)
    sigma, phi = np.linalg.eigh(Z)
    phi_i = phi[:, -k:] * sigma[-k:] ** 0.25
    if use_hankel_L:
        Z_L = get_hankel(sqrt_T_prime, True)
        sigma_L, phi_L = np.linalg.eigh(Z_L)
        phi_j = phi_L[:, -k:] * sigma_L[-k:] ** 0.25
    else:
        phi_j = phi_i
    filters = np.kron(phi_i, phi_j)
    return filters.astype(np.float32)


def _round_up(x: int, m: int) -> int:
    return ((x + m - 1) // m) * m


# ---------------------------------- generation-aware tuning -------------------------------------

def _tpu_tuning():
    """Return (vmem_limit_bytes, mxu_align) for the attached TPU generation."""
    kind = ""
    try:
        kind = jax.devices()[0].device_kind.lower()
    except Exception:
        pass
    mib = 1024 * 1024
    if "v5" in kind:                     # v5e/v5p: 128 MiB VMEM, 128-wide MXU tiles
        return 100 * mib, 128
    if "v6" in kind:                     # v6e: 128 MiB VMEM, 2x256x256 MXU
        return 100 * mib, 256
    if "v7" in kind or "7x" in kind:     # v7x: 64 MiB VMEM per TC, 256x256 MXU
        return 48 * mib, 256
    return 48 * mib, 128                 # conservative defaults if detection fails


# ----------------------------------------- Pallas kernel ----------------------------------------

def _spectral_attention_kernel(
    x_ref,       # (tc, Dp)        compute dtype
    w_ref,       # (Dp, 3*K2p)     compute dtype  [Wq | Wk | Wv] (filters pre-folded)
    b_ref,       # (1, 3*K2p)      f32            [bq | bk | bv]
    wo_ref,      # (K2p, Dp)       compute dtype
    bo_ref,      # (1, Dp)         f32
    decay_ref,   # (1, tc)         f32            decay of this chunk (0 in padding)
    o_ref,       # (tc, Dp)        compute dtype
    s_ref,       # (K2p, K2p)      f32 VMEM scratch: running linear-attention state
    *,
    K2p: int,
    compute_dtype,
):
    c = pl.program_id(1)
    cdt = compute_dtype
    tc = x_ref.shape[0]

    # Reset the running state at the start of every batch element's chunk loop.
    # (Relies on the chunk axis being the innermost, sequentially-iterated grid axis.)
    @pl.when(c == 0)
    def _():
        s_ref[...] = jnp.zeros_like(s_ref)

    # Fused Q/K/V: one MXU pass over [Wq | Wk | Wv] directly from x (no Hp dimension).
    qkv = jnp.dot(x_ref[...], w_ref[...], preferred_element_type=jnp.float32) + b_ref[...]
    q = qkv[:, :K2p].astype(cdt)                      # (tc, K2p)
    k = qkv[:, K2p:2 * K2p].astype(cdt)               # (tc, K2p)
    v = qkv[:, 2 * K2p:].astype(cdt)                  # (tc, K2p)

    # Fold decay into K exactly once; the single transpose runs in the compute dtype.
    decay = decay_ref[...].astype(cdt)                # (1, tc)
    kdt = k.T * decay                                 # (K2p, tc): column s = decay[s]*K[s]

    # ---- intra-chunk causal term: sum_{s<=t, same chunk} (Q[t].K[s]) * decay[s] * V[s]
    a = jnp.dot(q, kdt, preferred_element_type=jnp.float32)            # (tc, tc)
    row = jax.lax.broadcasted_iota(jnp.int32, (tc, tc), 0)
    col = jax.lax.broadcasted_iota(jnp.int32, (tc, tc), 1)
    a = jnp.where(row >= col, a, 0.0)                                   # causal mask only
    y = jnp.dot(a.astype(cdt), v, preferred_element_type=jnp.float32)   # (tc, K2p)

    # ---- inter-chunk term from the running state (all previous chunks).
    y = y + jnp.dot(q, s_ref[...].astype(cdt), preferred_element_type=jnp.float32)

    # ---- state update: S += sum_{s in chunk} decay[s] * K[s]^T V[s]
    # TODO(synk): for very long sequences with bf16 compute, keep kdt/v in f32 here to
    # bound drift of the running state (accumulation itself is already f32).
    s_ref[...] += jnp.dot(kdt, v, preferred_element_type=jnp.float32)

    # ---- o_proj
    out = jnp.dot(y.astype(cdt), wo_ref[...], preferred_element_type=jnp.float32) + bo_ref[...]
    o_ref[...] = out.astype(o_ref.dtype)


# -------------------------------------- host-side packing ---------------------------------------

def pack_spectral_attention_params(params, *, compute_dtype=jnp.bfloat16, align=None):
    """Fold i_proj + spectral filters into direct D->K2 maps, fuse [Q|K|V] and o_proj
    weights, and zero-pad lane-dense.  Call ONCE per parameter set (not per forward)."""
    if align is None:
        _, align = _tpu_tuning()
    f32 = jnp.float32
    cdt = compute_dtype

    wi = params["wi_t"].astype(f32)      # (D, H)
    bi = params["bi"].astype(f32)        # (H,)
    qf = params["qf"].astype(f32)        # (H, K2)
    kf = params["kf"].astype(f32)        # (H, K2)
    wv = params["wv_t"].astype(f32)      # (D, K2)
    bv = params["bv"].astype(f32)        # (K2,)
    wo = params["wo_t"].astype(f32)      # (K2, D)
    bo = params["bo"].astype(f32)        # (D,)
    decay = params["decay"].astype(f32)  # (T,)

    D, _H = wi.shape
    K2 = qf.shape[1]
    T = decay.shape[0]

    # Algebraic fold: Q = x (Wi Qf) + (bi Qf), K = x (Wi Kf) + (bi Kf).
    wq, bq = wi @ qf, bi @ qf
    wk, bk = wi @ kf, bi @ kf

    Dp = _round_up(D, align)
    K2p = _round_up(K2, align)

    w_qkv = jnp.zeros((Dp, 3 * K2p), cdt)
    w_qkv = w_qkv.at[:D, 0 * K2p:0 * K2p + K2].set(wq.astype(cdt))
    w_qkv = w_qkv.at[:D, 1 * K2p:1 * K2p + K2].set(wk.astype(cdt))
    w_qkv = w_qkv.at[:D, 2 * K2p:2 * K2p + K2].set(wv.astype(cdt))

    b_qkv = jnp.zeros((1, 3 * K2p), f32)
    b_qkv = b_qkv.at[:, 0 * K2p:0 * K2p + K2].set(bq.reshape(1, K2))
    b_qkv = b_qkv.at[:, 1 * K2p:1 * K2p + K2].set(bk.reshape(1, K2))
    b_qkv = b_qkv.at[:, 2 * K2p:2 * K2p + K2].set(bv.reshape(1, K2))

    wo_p = jnp.zeros((K2p, Dp), cdt).at[:K2, :D].set(wo.astype(cdt))
    bo_p = jnp.zeros((1, Dp), f32).at[:, :D].set(bo.reshape(1, D))

    return {
        "w_qkv": w_qkv, "b_qkv": b_qkv, "wo": wo_p, "bo": bo_p,
        "decay": decay.reshape(1, T),
        "D": D, "Dp": Dp, "K2p": K2p, "T": T,
        "compute_dtype": cdt,
    }


def spectral_attention(x, packed, *, chunk=256, vmem_limit_bytes=None):
    """SpectralAttention forward pass as a single chunked Pallas TPU kernel."""
    B, T, D = x.shape
    assert T == packed["T"] and D == packed["D"]
    cdt = packed["compute_dtype"]
    Dp, K2p = packed["Dp"], packed["K2p"]
    f32 = jnp.float32

    if vmem_limit_bytes is None:
        vmem_limit_bytes, _ = _tpu_tuning()

    # Sequence chunking: single chunk for short sequences, otherwise a lane-aligned
    # (multiple-of-128) chunk so the (1, tc) decay block stays (8,128)-legal.  Use
    # chunk=256 on v6e/v7x for full-width 256x256 MXU passes.
    if T <= chunk:
        tc = _round_up(T, 16)
    else:
        tc = _round_up(chunk, 128)
    Tp = _round_up(T, tc)
    num_chunks = Tp // tc

    # Pad/cast x only when needed (skip the extra HBM round trip for aligned inputs).
    if (Tp, Dp) == (T, D) and x.dtype == cdt:
        xp = x
    else:
        xp = jnp.zeros((B, Tp, Dp), cdt).at[:, :T, :D].set(x.astype(cdt))

    decay = packed["decay"]
    if Tp != T:
        decay = jnp.zeros((1, Tp), f32).at[:, :T].set(decay)

    kernel = functools.partial(_spectral_attention_kernel, K2p=K2p, compute_dtype=cdt)

    # Constant weights/biases: block index never changes -> single-buffer (halves their
    # resident VMEM; double-buffering a never-refetched block buys nothing).
    const = lambda shape: pl.BlockSpec(shape, lambda b, c: (0,) * len(shape),
                                       pipeline_mode=pl.Buffered(1))

    # Streamed x: deeper pipelining once the chunk loop is long enough to benefit.
    if num_chunks >= 3:
        x_spec = pl.BlockSpec((pl.Squeezed(), tc, Dp), lambda b, c: (b, c, 0),
                              pipeline_mode=pl.Buffered(3))
    else:
        x_spec = pl.BlockSpec((pl.Squeezed(), tc, Dp), lambda b, c: (b, c, 0))
    o_spec = pl.BlockSpec((pl.Squeezed(), tc, Dp), lambda b, c: (b, c, 0))

    out = pl.pallas_call(
        kernel,
        out_shape=jax.ShapeDtypeStruct((B, Tp, Dp), cdt),
        grid_spec=pltpu.PrefetchScalarGridSpec(
            num_scalar_prefetch=0,
            grid=(B, num_chunks),
            in_specs=[
                x_spec,                                                  # x chunk
                const((Dp, 3 * K2p)),                                    # [Wq | Wk | Wv]
                const((1, 3 * K2p)),                                     # [bq | bk | bv]
                const((K2p, Dp)),                                        # Wo
                const((1, Dp)),                                          # bo
                pl.BlockSpec((1, tc), lambda b, c: (0, c)),              # decay chunk
            ],
            out_specs=o_spec,
            scratch_shapes=[pltpu.VMEM((K2p, K2p), f32)],                # running state
        ),
        compiler_params=pltpu.CompilerParams(
            # Batch axis is independent (megacore-parallel on v7x); the chunk axis
            # carries the running state and must stay sequential.  NOTE: on v7x (2 TCs)
            # B >= 2 is needed to keep both cores busy.
            dimension_semantics=("parallel", "arbitrary"),
            # Generation-aware: ~100 MiB on v5e/v6e (128 MiB physical), 48 MiB on v7x.
            vmem_limit_bytes=vmem_limit_bytes,
        ),
    )(xp, packed["w_qkv"], packed["b_qkv"], packed["wo"], packed["bo"], decay)

    if (Tp, Dp) != (T, D):
        out = out[:, :T, :D]
    return out


# ------------------------------------- params + reference ---------------------------------------

def init_params(seq_len, n_embd, k, key):
    filters = get_tensorized_spectral_filters(n=seq_len, k=k)   # (H, K2)
    H, K2 = filters.shape
    qf = jnp.asarray(filters, jnp.float32)
    kf = jnp.asarray(filters, jnp.float32)  # second LearnableSpectralFilters instance

    ks = jax.random.split(key, 7)

    def linear_init(kw, kb, fan_in, fan_out):
        bound = 1.0 / math.sqrt(fan_in)
        w = jax.random.uniform(kw, (fan_out, fan_in), jnp.float32, -bound, bound)
        b = jax.random.uniform(kb, (fan_out,), jnp.float32, -bound, bound)
        return w, b

    wi, bi = linear_init(ks[0], ks[1], n_embd, H)    # i_proj: Linear(n_embd, H)
    wv, bv = linear_init(ks[2], ks[3], n_embd, K2)   # v_proj: Linear(n_embd, K2)
    wo, bo = linear_init(ks[4], ks[5], K2, n_embd)   # o_proj: Linear(K2, n_embd)

    # Module initializes decay to ones; use a non-trivial deterministic decay so the
    # kernel's decay handling is actually exercised by the numerical check.
    decay = jax.random.uniform(ks[6], (seq_len,), jnp.float32, 0.5, 1.5)

    return {
        "wi_t": wi.T, "bi": bi,
        "wv_t": wv.T, "bv": bv,
        "qf": qf, "kf": kf,
        "wo_t": wo.T, "bo": bo,
        "decay": decay,
    }


def reference_forward(x, params):
    """Pure-JAX mirror of the PyTorch forward (explicit cumsum of outer products)."""
    T = x.shape[1]
    x_proj = x @ params["wi_t"] + params["bi"]
    Q = jnp.einsum("bth,hk->btk", x_proj, params["qf"])
    K = jnp.einsum("bth,hk->btk", x_proj, params["kf"])
    V = x @ params["wv_t"] + params["bv"]
    Z = jnp.einsum("bsp,bsn->bspn", V, K)
    Z = Z * params["decay"].reshape(1, T, 1, 1)
    Hc = jnp.cumsum(Z, axis=1)
    Y = jnp.einsum("btn,btpn->btp", Q, Hc)
    return Y @ params["wo_t"] + params["bo"]


# ---------------------------------------------- main ---------------------------------------------

if __name__ == "__main__":
    def check(B, seq_len, n_embd, k, chunk, key):
        kx, kp = jax.random.split(key)
        x = jax.random.normal(kx, (B, seq_len, n_embd), jnp.float32)
        params = init_params(seq_len, n_embd, k, kp)
        ref = np.asarray(reference_forward(x, params))

        # Exact-arithmetic path (f32 MXU inputs, f32 output) — tight check.
        packed_f32 = pack_spectral_attention_params(params, compute_dtype=jnp.float32)
        out_f32 = jax.block_until_ready(spectral_attention(x, packed_f32, chunk=chunk))
        assert out_f32.shape == (B, seq_len, n_embd)
        np.testing.assert_allclose(np.asarray(out_f32, np.float32), ref, rtol=2e-4, atol=1e-3)

        # Fast path (bf16 MXU inputs/output, f32 accumulation) — scale-relative check.
        packed_bf16 = pack_spectral_attention_params(params, compute_dtype=jnp.bfloat16)
        out_bf16 = jax.block_until_ready(spectral_attention(x, packed_bf16, chunk=chunk))
        assert out_bf16.shape == (B, seq_len, n_embd)
        scale = float(np.max(np.abs(ref))) + 1e-6
        err = float(np.max(np.abs(np.asarray(out_bf16, np.float32) - ref))) / scale
        assert err < 0.1, f"bf16 path error too large: {err}"

    root = jax.random.PRNGKey(0)
    k1, k2 = jax.random.split(root)

    # Small single-chunk case (toy module shapes).
    check(B=2, seq_len=8, n_embd=32, k=3, chunk=256, key=k1)
    # Multi-chunk case: exercises the running-state recurrence across sequence chunks.
    check(B=2, seq_len=256, n_embd=32, k=3, chunk=128, key=k2)

    print("KERNEL_OK")
</pallas_src>

<mosaic_0001>
module attributes {stable_mosaic.version = 11 : i64} {
  func.func @_spectral_attention_kernel(%arg0: i32, %arg1: i32, %arg2: memref<1x16x128xf32, #tpu.memory_space<vmem>>, %arg3: memref<128x384xf32, #tpu.memory_space<vmem>>, %arg4: memref<1x384xf32, #tpu.memory_space<vmem>>, %arg5: memref<128x128xf32, #tpu.memory_space<vmem>>, %arg6: memref<1x128xf32, #tpu.memory_space<vmem>>, %arg7: memref<1x16xf32, #tpu.memory_space<vmem>>, %arg8: memref<1x16x128xf32, #tpu.memory_space<vmem>>, %arg9: memref<128x128xf32, #tpu.memory_space<vmem>>) attributes {dimension_semantics = [#tpu.dimension_semantics<parallel>, #tpu.dimension_semantics<arbitrary>], iteration_bounds = array<i64: 2, 1>, scalar_prefetch = 0 : i64, scratch_operands = 1 : i64, tpu.core_type = #tpu.core_type<tc>, window_params = [{transform_indices = @transform_0, window_bounds = array<i64: 1, 16, 128>}, {pipeline_mode = #tpu.pipeline_mode<synchronous>, transform_indices = @transform_1, window_bounds = array<i64: 128, 384>}, {pipeline_mode = #tpu.pipeline_mode<synchronous>, transform_indices = @transform_2, window_bounds = array<i64: 1, 384>}, {pipeline_mode = #tpu.pipeline_mode<synchronous>, transform_indices = @transform_3, window_bounds = array<i64: 128, 128>}, {pipeline_mode = #tpu.pipeline_mode<synchronous>, transform_indices = @transform_4, window_bounds = array<i64: 1, 128>}, {transform_indices = @transform_5, window_bounds = array<i64: 1, 16>}, {transform_indices = @transform_6, window_bounds = array<i64: 1, 16, 128>}]} {
    %c0_i32 = arith.constant 0 : i32
    %0 = arith.cmpi eq, %arg1, %c0_i32 : i32
    %1 = arith.extui %0 : i1 to i32
    %c0_i32_0 = arith.constant 0 : i32
    %2 = arith.cmpi ne, %1, %c0_i32_0 : i32
    scf.if %2 {
      %cst_28 = arith.constant 0.000000e+00 : f32
      %39 = vector.broadcast %cst_28 : f32 to vector<128x128xf32>
      %c0_29 = arith.constant 0 : index
      %c0_30 = arith.constant 0 : index
      %40 = vector.load %arg9[%c0_29, %c0_30] : memref<128x128xf32, #tpu.memory_space<vmem>>, vector<128x128xf32>
      tpu.vector_store %arg9[%c0_29, %c0_30], %39 {strides = array<i32>} : memref<128x128xf32, #tpu.memory_space<vmem>>, vector<128x128xf32>,
    } else {
    }
    %c0 = arith.constant 0 : index
    %c0_1 = arith.constant 0 : index
    %c0_2 = arith.constant 0 : index
    %3 = vector.load %arg2[%c0, %c0_1, %c0_2] : memref<1x16x128xf32, #tpu.memory_space<vmem>>, vector<1x16x128xf32>
    %4 = vector.shape_cast %3 : vector<1x16x128xf32> to vector<16x128xf32>
    %c0_3 = arith.constant 0 : index
    %c0_4 = arith.constant 0 : index
    %5 = vector.load %arg3[%c0_3, %c0_4] : memref<128x384xf32, #tpu.memory_space<vmem>>, vector<128x384xf32>
    %cst = arith.constant dense<0.000000e+00> : vector<16x384xf32>
    %6 = tpu.matmul %4, %5, %cst {dimension_numbers = #tpu.dot_dimension_numbers<[1], [0], [0], [1], [0, 0, 1, 1], [], []>} : vector<16x128xf32>, vector<128x384xf32>, vector<16x384xf32> -> vector<16x384xf32>
    %c0_5 = arith.constant 0 : index
    %c0_6 = arith.constant 0 : index
    %7 = vector.load %arg4[%c0_5, %c0_6] : memref<1x384xf32, #tpu.memory_space<vmem>>, vector<1x384xf32>
    %8 = vector.broadcast %7 : vector<1x384xf32> to vector<16x384xf32>
    %9 = arith.addf %6, %8 : vector<16x384xf32>
    %10 = vector.extract_strided_slice %9 {offsets = [0, 0], sizes = [16, 128], strides = [1, 1]} : vector<16x384xf32> to vector<16x128xf32>
    %11 = vector.extract_strided_slice %9 {offsets = [0, 128], sizes = [16, 128], strides = [1, 1]} : vector<16x384xf32> to vector<16x128xf32>
    %12 = vector.extract_strided_slice %9 {offsets = [0, 256], sizes = [16, 128], strides = [1, 1]} : vector<16x384xf32> to vector<16x128xf32>
    %c0_7 = arith.constant 0 : index
    %c0_8 = arith.constant 0 : index
    %13 = vector.load %arg7[%c0_7, %c0_8] : memref<1x16xf32, #tpu.memory_space<vmem>>, vector<1x16xf32>
    %14 = tpu.transpose %11, [1, 0] : vector<16x128xf32> -> vector<128x16xf32>
    %15 = vector.broadcast %13 : vector<1x16xf32> to vector<128x16xf32>
    %16 = arith.mulf %14, %15 : vector<128x16xf32>
    %cst_9 = arith.constant dense<0.000000e+00> : vector<16x16xf32>
    %17 = tpu.matmul %10, %16, %cst_9 {dimension_numbers = #tpu.dot_dimension_numbers<[1], [0], [0], [1], [0, 0, 1, 1], [], []>} : vector<16x128xf32>, vector<128x16xf32>, vector<16x16xf32> -> vector<16x16xf32>
    %18 = tpu.iota {dimensions = array<i32: 0>} : vector<16x16xi32>
    %19 = tpu.iota {dimensions = array<i32: 1>} : vector<16x16xi32>
    %20 = arith.cmpi sge, %18, %19 : vector<16x16xi32>
    %cst_10 = arith.constant 0.000000e+00 : f32
    %21 = vector.broadcast %cst_10 : f32 to vector<16x16xf32>
    %22 = arith.select %20, %17, %21 : vector<16x16xi1>, vector<16x16xf32>
    %cst_11 = arith.constant dense<0.000000e+00> : vector<16x128xf32>
    %23 = tpu.matmul %22, %12, %cst_11 {dimension_numbers = #tpu.dot_dimension_numbers<[1], [0], [0], [1], [0, 0, 1, 1], [], []>} : vector<16x16xf32>, vector<16x128xf32>, vector<16x128xf32> -> vector<16x128xf32>
    %c0_12 = arith.constant 0 : index
    %c0_13 = arith.constant 0 : index
    %24 = vector.load %arg9[%c0_12, %c0_13] : memref<128x128xf32, #tpu.memory_space<vmem>>, vector<128x128xf32>
    %cst_14 = arith.constant dense<0.000000e+00> : vector<16x128xf32>
    %25 = tpu.matmul %10, %24, %cst_14 {dimension_numbers = #tpu.dot_dimension_numbers<[1], [0], [0], [1], [0, 0, 1, 1], [], []>} : vector<16x128xf32>, vector<128x128xf32>, vector<16x128xf32> -> vector<16x128xf32>
    %26 = arith.addf %23, %25 : vector<16x128xf32>
    %c0_15 = arith.constant 0 : index
    %c0_16 = arith.constant 0 : index
    %27 = vector.load %arg9[%c0_15, %c0_16] : memref<128x128xf32, #tpu.memory_space<vmem>>, vector<128x128xf32>
    %cst_17 = arith.constant dense<0.000000e+00> : vector<128x128xf32>
    %28 = tpu.matmul %16, %12, %cst_17 {dimension_numbers = #tpu.dot_dimension_numbers<[1], [0], [0], [1], [0, 0, 1, 1], [], []>} : vector<128x16xf32>, vector<16x128xf32>, vector<128x128xf32> -> vector<128x128xf32>
    %29 = arith.addf %27, %28 : vector<128x128xf32>
    %c0_18 = arith.constant 0 : index
    %c0_19 = arith.constant 0 : index
    %30 = vector.load %arg9[%c0_18, %c0_19] : memref<128x128xf32, #tpu.memory_space<vmem>>, vector<128x128xf32>
    tpu.vector_store %arg9[%c0_18, %c0_19], %29 {strides = array<i32>} : memref<128x128xf32, #tpu.memory_space<vmem>>, vector<128x128xf32>,
    %c0_20 = arith.constant 0 : index
    %c0_21 = arith.constant 0 : index
    %31 = vector.load %arg5[%c0_20, %c0_21] : memref<128x128xf32, #tpu.memory_space<vmem>>, vector<128x128xf32>
    %cst_22 = arith.constant dense<0.000000e+00> : vector<16x128xf32>
    %32 = tpu.matmul %26, %31, %cst_22 {dimension_numbers = #tpu.dot_dimension_numbers<[1], [0], [0], [1], [0, 0, 1, 1], [], []>} : vector<16x128xf32>, vector<128x128xf32>, vector<16x128xf32> -> vector<16x128xf32>
    %c0_23 = arith.constant 0 : index
    %c0_24 = arith.constant 0 : index
    %33 = vector.load %arg6[%c0_23, %c0_24] : memref<1x128xf32, #tpu.memory_space<vmem>>, vector<1x128xf32>
    %34 = vector.broadcast %33 : vector<1x128xf32> to vector<16x128xf32>
    %35 = arith.addf %32, %34 : vector<16x128xf32>
    %c0_25 = arith.constant 0 : index
    %c0_26 = arith.constant 0 : index
    %c0_27 = arith.constant 0 : index
    %36 = vector.load %arg8[%c0_25, %c0_26, %c0_27] : memref<1x16x128xf32, #tpu.memory_space<vmem>>, vector<1x16x128xf32>
    %37 = vector.shape_cast %36 : vector<1x16x128xf32> to vector<16x128xf32>
    %38 = vector.shape_cast %35 : vector<16x128xf32> to vector<1x16x128xf32>
    tpu.vector_store %arg8[%c0_25, %c0_26, %c0_27], %38 {strides = array<i32>} : memref<1x16x128xf32, #tpu.memory_space<vmem>>, vector<1x16x128xf32>,
    return
  }
  func.func @transform_0(%arg0: i32, %arg1: i32) -> (i32, i32, i32) {
    %c0_i32 = arith.constant 0 : i32
    %c0_i32_0 = arith.constant 0 : i32
    return %arg0, %arg1, %c0_i32 : i32, i32, i32
  }
  func.func @transform_1(%arg0: i32, %arg1: i32) -> (i32, i32) {
    %c0_i32 = arith.constant 0 : i32
    %c0_i32_0 = arith.constant 0 : i32
    %c0_i32_1 = arith.constant 0 : i32
    return %c0_i32, %c0_i32_0 : i32, i32
  }
  func.func @transform_2(%arg0: i32, %arg1: i32) -> (i32, i32) {
    %c0_i32 = arith.constant 0 : i32
    %c0_i32_0 = arith.constant 0 : i32
    %c0_i32_1 = arith.constant 0 : i32
    return %c0_i32, %c0_i32_0 : i32, i32
  }
  func.func @transform_3(%arg0: i32, %arg1: i32) -> (i32, i32) {
    %c0_i32 = arith.constant 0 : i32
    %c0_i32_0 = arith.constant 0 : i32
    %c0_i32_1 = arith.constant 0 : i32
    return %c0_i32, %c0_i32_0 : i32, i32
  }
  func.func @transform_4(%arg0: i32, %arg1: i32) -> (i32, i32) {
    %c0_i32 = arith.constant 0 : i32
    %c0_i32_0 = arith.constant 0 : i32
    %c0_i32_1 = arith.constant 0 : i32
    return %c0_i32, %c0_i32_0 : i32, i32
  }
  func.func @transform_5(%arg0: i32, %arg1: i32) -> (i32, i32) {
    %c0_i32 = arith.constant 0 : i32
    %c0_i32_0 = arith.constant 0 : i32
    return %c0_i32, %arg1 : i32, i32
  }
  func.func @transform_6(%arg0: i32, %arg1: i32) -> (i32, i32, i32) {
    %c0_i32 = arith.constant 0 : i32
    %c0_i32_0 = arith.constant 0 : i32
    return %arg0, %arg1, %c0_i32 : i32, i32, i32
  }
}

</mosaic_0001>

<llo_original>
// kernel: tpu_custom_call.1
$region0: #{tpu_custom_call.1}
  #allocation0 [shape = 'u32[]', space=smem, size = 0x4, offset = 0x4, fixed_abs, tag = 'smem constant byte address 0x4 - core index']
  #allocation1 [shape = 'u32[144,128]{1,0:T(1,128)}', space=vmem, size = 0x12000, scoped, tag = 'internal scratch']
  #allocation2 [shape = 'f32[128,128]{1,0:T(8,128)}', space=vmem, size = 0x10000, scoped, tag = 'scratch operand']
  %s0 = inlined_call_operand.hbm [shape: f32[2,16,128], index: 0, kind: input, shape index: {}]
  %s1 = inlined_call_operand.hbm [shape: f32[128,384], index: 1, kind: input, shape index: {}]
  %s2 = inlined_call_operand.vmem [shape: f32[1,384], index: 2, kind: input, shape index: {}]
  %s3 = inlined_call_operand.hbm [shape: f32[128,128], index: 3, kind: input, shape index: {}]
  %s4 = inlined_call_operand.vmem [shape: f32[1,128], index: 4, kind: input, shape index: {}]
  %s5 = inlined_call_operand.vmem [shape: f32[1,16], index: 5, kind: input, shape index: {}]
  %s6 = inlined_call_operand.hbm [shape: f32[2,16,128], index: 6, kind: output, shape index: {}]
  %s7 = sld [smem:[#allocation0]]
  $region73: #{tpu_custom_call.1} parent=0
    _
  %s9 = ssub.s32 1, %s7
  %s10 = scalar_select 0, %s9, %s7
  $region1: #{tpu_custom_call.1} parent=0
    #allocation3 [shape = 'u8[16384]{0}', space=vmem, size = 0x4000, scoped, tag = 'input window, operand 0']
    #allocation4 [shape = 's32[2]{0}', space=sflag, size = 0x8, scoped, tag = 'scoped memory for tpu_custom_call.1']
    #allocation5 [shape = 's32[2]{0}', space=sflag, size = 0x8, scoped, tag = 'scoped memory for tpu_custom_call.1']
    #allocation6 [shape = 'u8[196608]{0}', space=vmem, size = 0x30000, scoped, tag = 'input window, operand 1, single buffered']
    #allocation7 [shape = 's32[1]{0}', space=sflag, size = 0x4, scoped, tag = 'scoped memory for tpu_custom_call.1']
    #allocation8 [shape = 'u8[65536]{0}', space=vmem, size = 0x10000, scoped, tag = 'input window, operand 3, single buffered']
    #allocation9 [shape = 'u8[16384]{0}', space=vmem, size = 0x4000, scoped, tag = 'output window, operand 0']
    %11 = vsyncpa [#allocation4], 0
    %s12 = scalar_lea.sflag [#allocation4], 1
    %13 = vsyncpa %s12, 0
    %14 = vsyncpa [#allocation7], 0
    %15 = vsyncpa [#allocation5], 0
    %s16 = scalar_lea.sflag [#allocation5], 1
    %17 = vsyncpa %s16, 0
    loop: start=0, step=1, limit=4
    $region2: #{tpu_custom_call.1} parent=1 // loop_pre_header
      _
    $region3: #{tpu_custom_call.1} parent=1 // loop_header
      %s19 = sphi 0, %s23
      %p20 = scmp.ge.s32.totalorder %s19, 4
      %s26 = sphi 0, %s38
      %s27 = sphi 0, %s34
      %s28 = sphi 0, %s26
      %s29 = sphi 0, %s27
      %s30 = sphi 0, %s28
      %s31 = sphi 0, %s29
      %s43 = sphi 0, %s45
      %s46 = sphi 0, %s43
      %s47 = sphi 0, %s46
      %s63 = sphi 0, %s47
      %s67 = sphi 0, %s67
      %s69 = sphi 0, %s67
      %s70 = sphi 0, %s69
      %s84 = sphi 0, %s70
      %s88 = sphi 0, %s88
      %s90 = sphi 0, %s88
      %s91 = sphi 0, %s90
      %s105 = sphi 0, %s91
      %s109 = sphi 0, %s109
      %s111 = sphi 0, %s109
      %s112 = sphi 0, %s111
      %s126 = sphi 0, %s112
      %s130 = sphi 0, %s130
      %s132 = sphi 0, %s130
      %s133 = sphi 0, %s132
      %s147 = sphi 0, %s133
      %s153 = sphi 0, %s155
      %s156 = sphi 0, %s153
      %s157 = sphi 0, %s156
      %s173 = sphi 0, %s157
      %s181 = sphi 0, %s183
      %s184 = sphi 0, %s181
      %s185 = sphi 0, %s184
      %s201 = sphi 0, %s185
    $region4: #{tpu_custom_call.1} parent=1 // loop_header_branch
      %22 = sbr.rel (%p20) target = $region8
    $region5: #{tpu_custom_call.1} parent=1 // loop_body
      %s24 = ssub.s32 %s19, 1
      %s25 = ssub.s32 %s19, 2
      %s32 = sadd.s32 1, %s27
      %p33 = scmp.ge.s32.totalorder %s32, 1
      %s34 = scalar_select %p33, 0, %s32
      %s35 = sadd.s32 1, %s26
      %s36 = scalar_select %p33, %s35, %s26
      %p37 = scmp.ge.s32.totalorder %s36, 2
      %s38 = scalar_select %p37, 0, %s36
      %s39 = ssub.s32 %s26, %s38
      %s40 = ssub.s32 %s27, %s34
      %s41 = sor.u32 %s39, %s40
      %p42 = scmp.eq.s32.totalorder %s41, 0
      %s44 = sadd.s32 %s43, 1
      %s45 = scalar_select %p42, %s43, %s44
      %p48 = pneg %p42
      %p49 = scmp.eq.s32.totalorder %s19, 1
      %p50 = por %p48, %p49
      %p51 = scmp.ne.s32.totalorder %s43, %s46
      %p52 = scmp.eq.s32.totalorder %s19, 0
      %p53 = por %p51, %p52
      %p54 = scmp.ne.s32.totalorder %s43, %s46
      %p55 = scmp.eq.s32.totalorder %s24, 1
      %p56 = por %p54, %p55
      %p57 = scmp.ne.s32.totalorder %s46, %s47
      %p58 = scmp.eq.s32.totalorder %s24, 0
      %p59 = por %p57, %p58
      %p60 = scmp.ne.s32.totalorder %s46, %s47
      %p61 = scmp.eq.s32.totalorder %s25, 1
      %p62 = por %p60, %p61
      %p64 = scmp.ne.s32.totalorder %s47, %s63
      %p65 = scmp.eq.s32.totalorder %s25, 0
      %p66 = por %p64, %p65
      %s68 = sadd.s32 %s67, 1
      %p71 = scmp.eq.s32.totalorder %s19, 1
      %p72 = scmp.ne.s32.totalorder %s67, %s69
      %p73 = scmp.eq.s32.totalorder %s19, 0
      %p74 = por %p72, %p73
      %p75 = scmp.ne.s32.totalorder %s67, %s69
      %p76 = scmp.eq.s32.totalorder %s24, 1
      %p77 = por %p75, %p76
      %p78 = scmp.ne.s32.totalorder %s69, %s70
      %p79 = scmp.eq.s32.totalorder %s24, 0
      %p80 = por %p78, %p79
      %p81 = scmp.ne.s32.totalorder %s69, %s70
      %p82 = scmp.eq.s32.totalorder %s25, 1
      %p83 = por %p81, %p82
      %p85 = scmp.ne.s32.totalorder %s70, %s84
      %p86 = scmp.eq.s32.totalorder %s25, 0
      %p87 = por %p85, %p86
      %s89 = sadd.s32 %s88, 1
      %p92 = scmp.eq.s32.totalorder %s19, 1
      %p93 = scmp.ne.s32.totalorder %s88, %s90
      %p94 = scmp.eq.s32.totalorder %s19, 0
      %p95 = por %p93, %p94
      %p96 = scmp.ne.s32.totalorder %s88, %s90
      %p97 = scmp.eq.s32.totalorder %s24, 1
      %p98 = por %p96, %p97
      %p99 = scmp.ne.s32.totalorder %s90, %s91
      %p100 = scmp.eq.s32.totalorder %s24, 0
      %p101 = por %p99, %p100
      %p102 = scmp.ne.s32.totalorder %s90, %s91
      %p103 = scmp.eq.s32.totalorder %s25, 1
      %p104 = por %p102, %p103
      %p106 = scmp.ne.s32.totalorder %s91, %s105
      %p107 = scmp.eq.s32.totalorder %s25, 0
      %p108 = por %p106, %p107
      %s110 = sadd.s32 %s109, 1
      %p113 = scmp.eq.s32.totalorder %s19, 1
      %p114 = scmp.ne.s32.totalorder %s109, %s111
      %p115 = scmp.eq.s32.totalorder %s19, 0
      %p116 = por %p114, %p115
      %p117 = scmp.ne.s32.totalorder %s109, %s111
      %p118 = scmp.eq.s32.totalorder %s24, 1
      %p119 = por %p117, %p118
      %p120 = scmp.ne.s32.totalorder %s111, %s112
      %p121 = scmp.eq.s32.totalorder %s24, 0
      %p122 = por %p120, %p121
      %p123 = scmp.ne.s32.totalorder %s111, %s112
      %p124 = scmp.eq.s32.totalorder %s25, 1
      %p125 = por %p123, %p124
      %p127 = scmp.ne.s32.totalorder %s112, %s126
      %p128 = scmp.eq.s32.totalorder %s25, 0
      %p129 = por %p127, %p128
      %s131 = sadd.s32 %s130, 1
      %p134 = scmp.eq.s32.totalorder %s19, 1
      %p135 = scmp.ne.s32.totalorder %s130, %s132
      %p136 = scmp.eq.s32.totalorder %s19, 0
      %p137 = por %p135, %p136
      %p138 = scmp.ne.s32.totalorder %s130, %s132
      %p139 = scmp.eq.s32.totalorder %s24, 1
      %p140 = por %p138, %p139
      %p141 = scmp.ne.s32.totalorder %s132, %s133
      %p142 = scmp.eq.s32.totalorder %s24, 0
      %p143 = por %p141, %p142
      %p144 = scmp.ne.s32.totalorder %s132, %s133
      %p145 = scmp.eq.s32.totalorder %s25, 1
      %p146 = por %p144, %p145
      %p148 = scmp.ne.s32.totalorder %s133, %s147
      %p149 = scmp.eq.s32.totalorder %s25, 0
      %p150 = por %p148, %p149
      %s151 = ssub.s32 %s27, %s34
      %p152 = scmp.eq.s32.totalorder %s151, 0
      %s154 = sadd.s32 %s153, 1
      %s155 = scalar_select %p152, %s153, %s154
      %p158 = pneg %p152
      %p159 = scmp.eq.s32.totalorder %s19, 1
      %p160 = por %p158, %p159
      %p161 = scmp.ne.s32.totalorder %s153, %s156
      %p162 = scmp.eq.s32.totalorder %s19, 0
      %p163 = por %p161, %p162
      %p164 = scmp.ne.s32.totalorder %s153, %s156
      %p165 = scmp.eq.s32.totalorder %s24, 1
      %p166 = por %p164, %p165
      %p167 = scmp.ne.s32.totalorder %s156, %s157
      %p168 = scmp.eq.s32.totalorder %s24, 0
      %p169 = por %p167, %p168
      %p170 = scmp.ne.s32.totalorder %s156, %s157
      %p171 = scmp.eq.s32.totalorder %s25, 1
      %p172 = por %p170, %p171
      %p174 = scmp.ne.s32.totalorder %s157, %s173
      %p175 = scmp.eq.s32.totalorder %s25, 0
      %p176 = por %p174, %p175
      %s177 = ssub.s32 %s26, %s38
      %s178 = ssub.s32 %s27, %s34
      %s179 = sor.u32 %s177, %s178
      %p180 = scmp.eq.s32.totalorder %s179, 0
      %s182 = sadd.s32 %s181, 1
      %s183 = scalar_select %p180, %s181, %s182
      %p186 = pneg %p180
      %p187 = scmp.eq.s32.totalorder %s19, 1
      %p188 = por %p186, %p187
      %p189 = scmp.ne.s32.totalorder %s181, %s184
      %p190 = scmp.eq.s32.totalorder %s19, 0
      %p191 = por %p189, %p190
      %p192 = scmp.ne.s32.totalorder %s181, %s184
      %p193 = scmp.eq.s32.totalorder %s24, 1
      %p194 = por %p192, %p193
      %p195 = scmp.ne.s32.totalorder %s184, %s185
      %p196 = scmp.eq.s32.totalorder %s24, 0
      %p197 = por %p195, %p196
      %p198 = scmp.ne.s32.totalorder %s184, %s185
      %p199 = scmp.eq.s32.totalorder %s25, 1
      %p200 = por %p198, %p199
      %p202 = scmp.ne.s32.totalorder %s185, %s201
      %p203 = scmp.eq.s32.totalorder %s25, 0
      %p204 = por %p202, %p203
      %p205 = scmp.le.s32.totalorder 1, %s19
      %p206 = scmp.lt.s32.totalorder %s19, 3
      %p207 = pnand %p205, %p206
      %p208 = pneg %p207
      // Predicated region
      $region9: #{tpu_custom_call.1} parent=5 // pred_check
        _
      $region10: #{tpu_custom_call.1} parent=5 // pred_check_branch
        %210 = sbr.rel (%p207) target = $region12
      $region11: #{tpu_custom_call.1} parent=5 // pred_region
        %s211 = ssub.s32 %s19, 1
        // Predicated region
        $region13: #{tpu_custom_call.1} parent=11 // pred_check
          %p212 = pneg %p80
        $region14: #{tpu_custom_call.1} parent=11 // pred_check_branch
          %214 = sbr.rel (%p212) target = $region16
        $region15: #{tpu_custom_call.1} parent=11 // pred_region
          %s216 = ssub.s32 6144, 6144
          %217 = vsyncadd [#allocation7], %s216
          %s218 = sshll.u32 [#allocation6], 4
          %s219 = int_to_ptr.vmem [resolvable:$true] %s218
          %224 = dma.hbm_to_vmem [thread:$0]  %s1, 6144, %s219, [#allocation7], 384, 384, 24
        $region16: #{tpu_custom_call.1} parent=11 // pred_fallthru
          _
        // Predicated region
        $region17: #{tpu_custom_call.1} parent=11 // pred_check
          %p225 = pneg %p101
        $region18: #{tpu_custom_call.1} parent=11 // pred_check_branch
          %227 = sbr.rel (%p225) target = $region20
        $region19: #{tpu_custom_call.1} parent=11 // pred_region
          _
        $region20: #{tpu_custom_call.1} parent=11 // pred_fallthru
          _
        // Predicated region
        $region21: #{tpu_custom_call.1} parent=11 // pred_check
          %p228 = pneg %p122
        $region22: #{tpu_custom_call.1} parent=11 // pred_check_branch
          %230 = sbr.rel (%p228) target = $region24
        $region23: #{tpu_custom_call.1} parent=11 // pred_region
          %s232 = ssub.s32 2048, 2048
          %233 = vsyncadd [#allocation7], %s232
          %s234 = sshll.u32 [#allocation8], 4
          %s235 = int_to_ptr.vmem [resolvable:$true] %s234
          %240 = dma.hbm_to_vmem [thread:$0]  %s3, 2048, %s235, [#allocation7], 128, 128, 8
        $region24: #{tpu_custom_call.1} parent=11 // pred_fallthru
          _
        // Predicated region
        $region25: #{tpu_custom_call.1} parent=11 // pred_check
          %p241 = pneg %p143
        $region26: #{tpu_custom_call.1} parent=11 // pred_check_branch
          %243 = sbr.rel (%p241) target = $region28
        $region27: #{tpu_custom_call.1} parent=11 // pred_region
          _
        $region28: #{tpu_custom_call.1} parent=11 // pred_fallthru
          _
        // Predicated region
        $region29: #{tpu_custom_call.1} parent=11 // pred_check
          %p244 = pneg %p169
        $region30: #{tpu_custom_call.1} parent=11 // pred_check_branch
          %246 = sbr.rel (%p244) target = $region32
        $region31: #{tpu_custom_call.1} parent=11 // pred_region
          %p247 = scmp.lt.s32.totalorder %s29, 0
          %s248 = scalar_select %p247, %s29, 0
          %s249 = scalar_lea.vmem %s5, %s248
        $region32: #{tpu_custom_call.1} parent=11 // pred_fallthru
          _
      $region12: #{tpu_custom_call.1} parent=5 // pred_fallthru
        _
      %p250 = scmp.lt.s32.totalorder %s19, 2
      // Predicated region
      $region33: #{tpu_custom_call.1} parent=5 // pred_check
        %p251 = pneg %p250
      $region34: #{tpu_custom_call.1} parent=5 // pred_check_branch
        %253 = sbr.rel (%p251) target = $region36
      $region35: #{tpu_custom_call.1} parent=5 // pred_region
        // Predicated region
        $region37: #{tpu_custom_call.1} parent=35 // pred_check
          %p254 = pneg %p53
        $region38: #{tpu_custom_call.1} parent=35 // pred_check_branch
          %256 = sbr.rel (%p254) target = $region40
        $region39: #{tpu_custom_call.1} parent=35 // pred_region
          %s257 = sand.u32 %s43, 1
          %s258 = scalar_lea.sflag [#allocation4], %s257
          %s259 = sand.u32 %s43, 1
          %s260 = smul.addr %s259, 16
          %s261 = scalar_lea.vmem [#allocation3], %s260
          %s262 = smul.u32 2, %s27
          %s264 = ssub.s32 256, 256
          %265 = vsyncadd %s258, %s264
          %s266 = smul.addr %s26, 2
          %s267 = sadd.s32 %s262, %s266
          %s268 = smul.addr %s267, 128
          %s269 = scalar_lea.hbm %s0, %s268
          %s270 = sshll.u32 %s261, 4
          %s271 = int_to_ptr.vmem [resolvable:$true] %s270
          %276 = dma.hbm_to_vmem [thread:$0]  %s269, 256, %s271, %s258, 128, 128, 8
        $region40: #{tpu_custom_call.1} parent=35 // pred_fallthru
          _
      $region36: #{tpu_custom_call.1} parent=5 // pred_fallthru
        _
      %p277 = scmp.le.s32.totalorder 1, %s19
      %p278 = scmp.lt.s32.totalorder %s19, 3
      %p279 = pnand %p277, %p278
      %p280 = pneg %p279
      // Predicated region
      $region41: #{tpu_custom_call.1} parent=5 // pred_check
        _
      $region42: #{tpu_custom_call.1} parent=5 // pred_check_branch
        %282 = sbr.rel (%p279) target = $region44
      $region43: #{tpu_custom_call.1} parent=5 // pred_region
        %s283 = ssub.s32 %s19, 1
        %s284 = sand.u32 %s46, 1
        %s285 = scalar_lea.sflag [#allocation4], %s284
        %s286 = sand.u32 %s46, 1
        %s287 = smul.addr %s286, 16
        %s288 = scalar_lea.vmem [#allocation3], %s287
        // Predicated region
        $region45: #{tpu_custom_call.1} parent=43 // pred_check
          %p289 = pneg %p59
        $region46: #{tpu_custom_call.1} parent=43 // pred_check_branch
          %291 = sbr.rel (%p289) target = $region48
        $region47: #{tpu_custom_call.1} parent=43 // pred_region
          %292 = dma.done %s285, 256
        $region48: #{tpu_custom_call.1} parent=43 // pred_fallthru
          _
        // Predicated region
        $region49: #{tpu_custom_call.1} parent=43 // pred_check
          %p293 = pneg %p80
        $region50: #{tpu_custom_call.1} parent=43 // pred_check_branch
          %295 = sbr.rel (%p293) target = $region52
        $region51: #{tpu_custom_call.1} parent=43 // pred_region
          %296 = dma.done [#allocation7], 6144
        $region52: #{tpu_custom_call.1} parent=43 // pred_fallthru
          _
        // Predicated region
        $region53: #{tpu_custom_call.1} parent=43 // pred_check
          %p297 = pneg %p122
        $region54: #{tpu_custom_call.1} parent=43 // pred_check_branch
          %299 = sbr.rel (%p297) target = $region56
        $region55: #{tpu_custom_call.1} parent=43 // pred_region
          %300 = dma.done [#allocation7], 2048
        $region56: #{tpu_custom_call.1} parent=43 // pred_fallthru
          _
        %s301 = sand.u32 %s46, 1
        %s302 = scalar_lea.sflag [#allocation4], %s301
        %s303 = sand.u32 %s46, 1
        %s304 = smul.addr %s303, 16
        %s305 = scalar_lea.vmem [#allocation3], %s304
        %p306 = pneg %p59
        %p307 = pneg %p56
        %p308 = pneg %p80
        %p309 = pneg %p77
        %p310 = pneg %p101
        %p311 = pneg %p98
        %p312 = pneg %p122
        %p313 = pneg %p119
        %p314 = pneg %p143
        %p315 = pneg %p140
        %p316 = scmp.lt.s32.totalorder %s29, 0
        %s317 = scalar_select %p316, %s29, 0
        %s318 = scalar_lea.vmem %s5, %s317
        %p319 = pneg %p169
        %p320 = pneg %p166
        %p321 = pneg %p197
        %p322 = pneg %p194
        %s323 = sand.u32 %s184, 1
        %s324 = scalar_lea.sflag [#allocation5], %s323
        %s325 = sand.u32 %s184, 1
        %s326 = smul.addr %s325, 16
        %s327 = scalar_lea.vmem [#allocation9], %s326
        %s328 = smul.u32 2, %s29
        %p329 = scmp.lt.s32.totalorder %s29, 0
        %s330 = scalar_select %p329, %s29, 0
        %s331 = scalar_lea.vmem %s5, %s330
        %s332 = smul.u32 2, %s29
        %p333 = scmp.eq.s32.totalorder %s29, 0
        // Predicated region
        $region57: #{tpu_custom_call.1} parent=43 // pred_check
          %p334 = pneg %p333
        $region58: #{tpu_custom_call.1} parent=43 // pred_check_branch
          %336 = sbr.rel (%p334) target = $region60
        $region59: #{tpu_custom_call.1} parent=43 // pred_region
          %337 = vst [vmem:[#allocation2] sm:$0xff] 0.0
          %338 = vst [vmem:[#allocation2 + $0x8] sm:$0xff] 0.0
          %339 = vst [vmem:[#allocation2 + $0x10] sm:$0xff] 0.0
          %340 = vst [vmem:[#allocation2 + $0x18] sm:$0xff] 0.0
          %341 = vst [vmem:[#allocation2 + $0x20] sm:$0xff] 0.0
          %342 = vst [vmem:[#allocation2 + $0x28] sm:$0xff] 0.0
          %343 = vst [vmem:[#allocation2 + $0x30] sm:$0xff] 0.0
          %344 = vst [vmem:[#allocation2 + $0x38] sm:$0xff] 0.0
          %345 = vst [vmem:[#allocation2 + $0x40] sm:$0xff] 0.0
          %346 = vst [vmem:[#allocation2 + $0x48] sm:$0xff] 0.0
          %347 = vst [vmem:[#allocation2 + $0x50] sm:$0xff] 0.0
          %348 = vst [vmem:[#allocation2 + $0x58] sm:$0xff] 0.0
          %349 = vst [vmem:[#allocation2 + $0x60] sm:$0xff] 0.0
          %350 = vst [vmem:[#allocation2 + $0x68] sm:$0xff] 0.0
          %351 = vst [vmem:[#allocation2 + $0x70] sm:$0xff] 0.0
          %352 = vst [vmem:[#allocation2 + $0x78] sm:$0xff] 0.0
        $region60: #{tpu_custom_call.1} parent=43 // pred_fallthru
          _
        %v353 = vld [vmem:[%s288] sm:$0xff]
        %v354 = vld [vmem:[%s288 + $0x8] sm:$0xff]
        %v355 = vld [vmem:[#allocation6] sm:$0xff]
        %v356 = vld [vmem:[#allocation6 + $0x8] sm:$0xff]
        %v357 = vld [vmem:[#allocation6 + $0x10] sm:$0xff]
        %v358 = vld [vmem:[#allocation6 + $0x18] sm:$0xff]
        %v359 = vld [vmem:[#allocation6 + $0x20] sm:$0xff]
        %v360 = vld [vmem:[#allocation6 + $0x28] sm:$0xff]
        %v361 = vld [vmem:[#allocation6 + $0x30] sm:$0xff]
        %v362 = vld [vmem:[#allocation6 + $0x38] sm:$0xff]
        %v363 = vld [vmem:[#allocation6 + $0x40] sm:$0xff]
        %v364 = vld [vmem:[#allocation6 + $0x48] sm:$0xff]
        %v365 = vld [vmem:[#allocation6 + $0x50] sm:$0xff]
        %v366 = vld [vmem:[#allocation6 + $0x58] sm:$0xff]
        %v367 = vld [vmem:[#allocation6 + $0x60] sm:$0xff]
        %v368 = vld [vmem:[#allocation6 + $0x68] sm:$0xff]
        %v369 = vld [vmem:[#allocation6 + $0x70] sm:$0xff]
        %v370 = vld [vmem:[#allocation6 + $0x78] sm:$0xff]
        %v371 = vld [vmem:[#allocation6 + $0x80] sm:$0xff]
        %v372 = vld [vmem:[#allocation6 + $0x88] sm:$0xff]
        %v373 = vld [vmem:[#allocation6 + $0x90] sm:$0xff]
        %v374 = vld [vmem:[#allocation6 + $0x98] sm:$0xff]
        %v375 = vld [vmem:[#allocation6 + $0xa0] sm:$0xff]
        %v376 = vld [vmem:[#allocation6 + $0xa8] sm:$0xff]
        %v377 = vld [vmem:[#allocation6 + $0xb0] sm:$0xff]
        %v378 = vld [vmem:[#allocation6 + $0xb8] sm:$0xff]
        %v379 = vld [vmem:[#allocation6 + $0xc0] sm:$0xff]
        %v380 = vld [vmem:[#allocation6 + $0xc8] sm:$0xff]
        %v381 = vld [vmem:[#allocation6 + $0xd0] sm:$0xff]
        %v382 = vld [vmem:[#allocation6 + $0xd8] sm:$0xff]
        %v383 = vld [vmem:[#allocation6 + $0xe0] sm:$0xff]
        %v384 = vld [vmem:[#allocation6 + $0xe8] sm:$0xff]
        %v385 = vld [vmem:[#allocation6 + $0xf0] sm:$0xff]
        %v386 = vld [vmem:[#allocation6 + $0xf8] sm:$0xff]
        %v387 = vld [vmem:[#allocation6 + $0x100] sm:$0xff]
        %v388 = vld [vmem:[#allocation6 + $0x108] sm:$0xff]
        %v389 = vld [vmem:[#allocation6 + $0x110] sm:$0xff]
        %v390 = vld [vmem:[#allocation6 + $0x118] sm:$0xff]
        %v391 = vld [vmem:[#allocation6 + $0x120] sm:$0xff]
        %v392 = vld [vmem:[#allocation6 + $0x128] sm:$0xff]
        %v393 = vld [vmem:[#allocation6 + $0x130] sm:$0xff]
        %v394 = vld [vmem:[#allocation6 + $0x138] sm:$0xff]
        %v395 = vld [vmem:[#allocation6 + $0x140] sm:$0xff]
        %v396 = vld [vmem:[#allocation6 + $0x148] sm:$0xff]
        %v397 = vld [vmem:[#allocation6 + $0x150] sm:$0xff]
        %v398 = vld [vmem:[#allocation6 + $0x158] sm:$0xff]
        %v399 = vld [vmem:[#allocation6 + $0x160] sm:$0xff]
        %v400 = vld [vmem:[#allocation6 + $0x168] sm:$0xff]
        %v401 = vld [vmem:[#allocation6 + $0x170] sm:$0xff]
        %v402 = vld [vmem:[#allocation6 + $0x178] sm:$0xff]
        %v403 = vld [vmem:[%s2] sm:$0x7]
        %v405 = vlaneseq
        %v406 = vshrl.u32 %v405, 7
        %v407 = vsub.s32 0, %v406
        %v408 = vrot.slane %v403, %v407
        %v409 = vlaneseq
        %v410 = vshrl.u32 %v409, 7
        %v411 = vsub.s32 1, %v410
        %v412 = vrot.slane %v403, %v411
        %v413 = vlaneseq
        %v414 = vshrl.u32 %v413, 7
        %v415 = vsub.s32 2, %v414
        %v416 = vrot.slane %v403, %v415
        %420 = vmatprep.subr.mxu0 %v356
        %421 = vmatpush1.msra.mxu0 %v355
        %422 = vmatprep.subr.mxu0 %v359
        %423 = vmatpush1.msra.mxu0 %v358
        %424 = vmatprep.subr.mxu0 %v362
        %425 = vmatpush1.msra.mxu0 %v361
        %426 = vmatprep.subr.mxu0 %v365
        %427 = vmatpush1.msra.mxu0 %v364
        %428 = vmatprep.subr.mxu0 %v368
        %429 = vmatpush1.msra.mxu0 %v367
        %430 = vmatprep.subr.mxu0 %v371
        %431 = vmatpush1.msra.mxu0 %v370
        %432 = vmatprep.subr.mxu0 %v374
        %433 = vmatpush1.msra.mxu0 %v373
        %434 = vmatprep.subr.mxu0 %v377
        %435 = vmatpush1.msra.mxu0 %v376
        %436 = vmatprep.subr.mxu0 %v380
        %437 = vmatpush1.msra.mxu0 %v379
        %438 = vmatprep.subr.mxu0 %v383
        %439 = vmatpush1.msra.mxu0 %v382
        %440 = vmatprep.subr.mxu0 %v386
        %441 = vmatpush1.msra.mxu0 %v385
        %442 = vmatprep.subr.mxu0 %v389
        %443 = vmatpush1.msra.mxu0 %v388
        %444 = vmatprep.subr.mxu0 %v392
        %445 = vmatpush1.msra.mxu0 %v391
        %446 = vmatprep.subr.mxu0 %v395
        %447 = vmatpush1.msra.mxu0 %v394
        %448 = vmatprep.subr.mxu0 %v398
        %449 = vmatpush1.msra.mxu0 %v397
        %450 = vmatprep.subr.mxu0 %v401
        %451 = vmatpush1.msra.mxu0 %v400
        %452 = vmatprep.subr.mxu0 0.0
        %453 = vmatpush1.msra.mxu0 0.0
        %454 = vmatprep.subr.mxu0 0.0
        %455 = vmatpush1.msra.mxu0 0.0
        %456 = vmatprep.subr.mxu0 0.0
        %457 = vmatpush1.msra.mxu0 0.0
        %458 = vmatprep.subr.mxu0 0.0
        %459 = vmatpush1.msra.mxu0 0.0
        %460 = vmatprep.subr.mxu0 0.0
        %461 = vmatpush1.msra.mxu0 0.0
        %462 = vmatprep.subr.mxu0 0.0
        %463 = vmatpush1.msra.mxu0 0.0
        %464 = vmatprep.subr.mxu0 0.0
        %465 = vmatpush1.msra.mxu0 0.0
        %466 = vmatprep.subr.mxu0 0.0
        %467 = vmatpush1.msra.mxu0 0.0
        %468 = vmatprep.subr.mxu0 0.0
        %469 = vmatpush1.msra.mxu0 0.0
        %470 = vmatprep.subr.mxu0 0.0
        %471 = vmatpush1.msra.mxu0 0.0
        %472 = vmatprep.subr.mxu0 0.0
        %473 = vmatpush1.msra.mxu0 0.0
        %474 = vmatprep.subr.mxu0 0.0
        %475 = vmatpush1.msra.mxu0 0.0
        %476 = vmatprep.subr.mxu0 0.0
        %477 = vmatpush1.msra.mxu0 0.0
        %478 = vmatprep.subr.mxu0 0.0
        %479 = vmatpush1.msra.mxu0 0.0
        %480 = vmatprep.subr.mxu0 0.0
        %481 = vmatpush1.msra.mxu0 0.0
        %482 = vmatprep.subr.mxu0 0.0
        %483 = vmatpush1.msra.mxu0 0.0
        %484 = vmatprep.mubr.f32.mxu0 0.0
        %485 = vmatmul.mubr.f32.gmra.mrb[0].mxu0 %v353
        %v486 = vpop.f32.mrb[0].mxu0
        %v487 = vadd.f32 %v408, %v486
        %v488 = vpop.f32.mrb[0].mxu0
        %v489 = vadd.f32 %v412, %v488
        %490 = vmatprep.mubr.f32.mxu0 0.0
        %491 = vmatmul.mubr.f32.gmra.mrb[0].mxu0 %v354
        %v492 = vpop.f32.mrb[0].mxu0
        %v493 = vadd.f32 %v408, %v492
        %v494 = vpop.f32.mrb[0].mxu0
        %v495 = vadd.f32 %v412, %v494
        %496 = vdwg.mxu0
        %497 = vmatprep.subr.mxu0 0.0
        %498 = vmatpush1.msra.mxu0 %v357
        %499 = vmatprep.subr.mxu0 0.0
        %500 = vmatpush1.msra.mxu0 %v360
        %501 = vmatprep.subr.mxu0 0.0
        %502 = vmatpush1.msra.mxu0 %v363
        %503 = vmatprep.subr.mxu0 0.0
        %504 = vmatpush1.msra.mxu0 %v366
        %505 = vmatprep.subr.mxu0 0.0
        %506 = vmatpush1.msra.mxu0 %v369
        %507 = vmatprep.subr.mxu0 0.0
        %508 = vmatpush1.msra.mxu0 %v372
        %509 = vmatprep.subr.mxu0 0.0
        %510 = vmatpush1.msra.mxu0 %v375
        %511 = vmatprep.subr.mxu0 0.0
        %512 = vmatpush1.msra.mxu0 %v378
        %513 = vmatprep.subr.mxu0 0.0
        %514 = vmatpush1.msra.mxu0 %v381
        %515 = vmatprep.subr.mxu0 0.0
        %516 = vmatpush1.msra.mxu0 %v384
        %517 = vmatprep.subr.mxu0 0.0
        %518 = vmatpush1.msra.mxu0 %v387
        %519 = vmatprep.subr.mxu0 0.0
        %520 = vmatpush1.msra.mxu0 %v390
        %521 = vmatprep.subr.mxu0 0.0
        %522 = vmatpush1.msra.mxu0 %v393
        %523 = vmatprep.subr.mxu0 0.0
        %524 = vmatpush1.msra.mxu0 %v396
        %525 = vmatprep.subr.mxu0 0.0
        %526 = vmatpush1.msra.mxu0 %v399
        %527 = vmatprep.subr.mxu0 0.0
        %528 = vmatpush1.msra.mxu0 %v402
        %529 = vmatprep.subr.mxu0 0.0
        %530 = vmatpush1.msra.mxu0 0.0
        %531 = vmatprep.subr.mxu0 0.0
        %532 = vmatpush1.msra.mxu0 0.0
        %533 = vmatprep.subr.mxu0 0.0
        %534 = vmatpush1.msra.mxu0 0.0
        %535 = vmatprep.subr.mxu0 0.0
        %536 = vmatpush1.msra.mxu0 0.0
        %537 = vmatprep.subr.mxu0 0.0
        %538 = vmatpush1.msra.mxu0 0.0
        %539 = vmatprep.subr.mxu0 0.0
        %540 = vmatpush1.msra.mxu0 0.0
        %541 = vmatprep.subr.mxu0 0.0
        %542 = vmatpush1.msra.mxu0 0.0
        %543 = vmatprep.subr.mxu0 0.0
        %544 = vmatpush1.msra.mxu0 0.0
        %545 = vmatprep.subr.mxu0 0.0
        %546 = vmatpush1.msra.mxu0 0.0
        %547 = vmatprep.subr.mxu0 0.0
        %548 = vmatpush1.msra.mxu0 0.0
        %549 = vmatprep.subr.mxu0 0.0
        %550 = vmatpush1.msra.mxu0 0.0
        %551 = vmatprep.subr.mxu0 0.0
        %552 = vmatpush1.msra.mxu0 0.0
        %553 = vmatprep.subr.mxu0 0.0
        %554 = vmatpush1.msra.mxu0 0.0
        %555 = vmatprep.subr.mxu0 0.0
        %556 = vmatpush1.msra.mxu0 0.0
        %557 = vmatprep.subr.mxu0 0.0
        %558 = vmatpush1.msra.mxu0 0.0
        %559 = vmatprep.subr.mxu0 0.0
        %560 = vmatpush1.msra.mxu0 0.0
        %561 = vmatprep.mubr.f32.mxu0 0.0
        %562 = vmatmul.mubr.f32.gmra.mrb[0].mxu0 %v353
        %v563 = vpop.f32.mrb[0].mxu0
        %v564 = vadd.f32 %v416, %v563
        %v565 = vpop.f32.mrb[0].mxu0
        %566 = vmatprep.mubr.f32.mxu0 0.0
        %567 = vmatmul.mubr.f32.gmra.mrb[0].mxu0 %v354
        %v568 = vpop.f32.mrb[0].mxu0
        %v569 = vadd.f32 %v416, %v568
        %v570 = vpop.f32.mrb[0].mxu0
        %571 = vdwg.mxu0
        %v572 = vld [vmem:[%s331] sm:$0x1]
        %573 = vxpose.xlu0.b32.start [1/16] %v489, 128
        %574 = vxpose.xlu0.b32.cont [2/16] %v495, 128
        %575 = vxpose.xlu0.b32.cont [3/16] 0.0, 128
        %576 = vxpose.xlu0.b32.cont [4/16] 0.0, 128
        %577 = vxpose.xlu0.b32.cont [5/16] 0.0, 128
        %578 = vxpose.xlu0.b32.cont [6/16] 0.0, 128
        %579 = vxpose.xlu0.b32.cont [7/16] 0.0, 128
        %580 = vxpose.xlu0.b32.cont [8/16] 0.0, 128
        %581 = vxpose.xlu0.b32.cont [9/16] 0.0, 128
        %582 = vxpose.xlu0.b32.cont [10/16] 0.0, 128
        %583 = vxpose.xlu0.b32.cont [11/16] 0.0, 128
        %584 = vxpose.xlu0.b32.cont [12/16] 0.0, 128
        %585 = vxpose.xlu0.b32.cont [13/16] 0.0, 128
        %586 = vxpose.xlu0.b32.cont [14/16] 0.0, 128
        %587 = vxpose.xlu0.b32.cont [15/16] 0.0, 128
        %588 = vxpose.xlu0.b32.end [16/16] 0.0, 128
        %v589 = vpop.trf.xlu0
        %v590 = vpop.trf.xlu0
        %v591 = vpop.trf.xlu0
        %v592 = vpop.trf.xlu0
        %v593 = vpop.trf.xlu0
        %v594 = vpop.trf.xlu0
        %v595 = vpop.trf.xlu0
        %v596 = vpop.trf.xlu0
        %v597 = vpop.trf.xlu0
        %v598 = vpop.trf.xlu0
        %v599 = vpop.trf.xlu0
        %v600 = vpop.trf.xlu0
        %v601 = vpop.trf.xlu0
        %v602 = vpop.trf.xlu0
        %v603 = vpop.trf.xlu0
        %v604 = vpop.trf.xlu0
        %v606 = vlaneseq
        %v607 = vshrl.u32 %v606, 7
        %v608 = vsub.s32 0, %v607
        %v609 = vrot.slane %v572, %v608
        %v611 = vmul.f32 %v589, %v609
        %v612 = vmul.f32 %v590, %v609
        %v613 = vmul.f32 %v591, %v609
        %v614 = vmul.f32 %v592, %v609
        %v615 = vmul.f32 %v593, %v609
        %v616 = vmul.f32 %v594, %v609
        %v617 = vmul.f32 %v595, %v609
        %v618 = vmul.f32 %v596, %v609
        %v619 = vmul.f32 %v597, %v609
        %v620 = vmul.f32 %v598, %v609
        %v621 = vmul.f32 %v599, %v609
        %v622 = vmul.f32 %v600, %v609
        %v623 = vmul.f32 %v601, %v609
        %v624 = vmul.f32 %v602, %v609
        %v625 = vmul.f32 %v603, %v609
        %v626 = vmul.f32 %v604, %v609
        %627 = vmatprep.subr.mxu0 0.0
        %628 = vmatpush1.msra.mxu0 %v611
        %629 = vmatprep.subr.mxu0 0.0
        %630 = vmatpush1.msra.mxu0 %v612
        %631 = vmatprep.subr.mxu0 0.0
        %632 = vmatpush1.msra.mxu0 %v613
        %633 = vmatprep.subr.mxu0 0.0
        %634 = vmatpush1.msra.mxu0 %v614
        %635 = vmatprep.subr.mxu0 0.0
        %636 = vmatpush1.msra.mxu0 %v615
        %637 = vmatprep.subr.mxu0 0.0
        %638 = vmatpush1.msra.mxu0 %v616
        %639 = vmatprep.subr.mxu0 0.0
        %640 = vmatpush1.msra.mxu0 %v617
        %641 = vmatprep.subr.mxu0 0.0
        %642 = vmatpush1.msra.mxu0 %v618
        %643 = vmatprep.subr.mxu0 0.0
        %644 = vmatpush1.msra.mxu0 %v619
        %645 = vmatprep.subr.mxu0 0.0
        %646 = vmatpush1.msra.mxu0 %v620
        %647 = vmatprep.subr.mxu0 0.0
        %648 = vmatpush1.msra.mxu0 %v621
        %649 = vmatprep.subr.mxu0 0.0
        %650 = vmatpush1.msra.mxu0 %v622
        %651 = vmatprep.subr.mxu0 0.0
        %652 = vmatpush1.msra.mxu0 %v623
        %653 = vmatprep.subr.mxu0 0.0
        %654 = vmatpush1.msra.mxu0 %v624
        %655 = vmatprep.subr.mxu0 0.0
        %656 = vmatpush1.msra.mxu0 %v625
        %657 = vmatprep.subr.mxu0 0.0
        %658 = vmatpush1.msra.mxu0 %v626
        %659 = vmatprep.subr.mxu0 0.0
        %660 = vmatpush1.msra.mxu0 0.0
        %661 = vmatprep.subr.mxu0 0.0
        %662 = vmatpush1.msra.mxu0 0.0
        %663 = vmatprep.subr.mxu0 0.0
        %664 = vmatpush1.msra.mxu0 0.0
        %665 = vmatprep.subr.mxu0 0.0
        %666 = vmatpush1.msra.mxu0 0.0
        %667 = vmatprep.subr.mxu0 0.0
        %668 = vmatpush1.msra.mxu0 0.0
        %669 = vmatprep.subr.mxu0 0.0
        %670 = vmatpush1.msra.mxu0 0.0
        %671 = vmatprep.subr.mxu0 0.0
        %672 = vmatpush1.msra.mxu0 0.0
        %673 = vmatprep.subr.mxu0 0.0
        %674 = vmatpush1.msra.mxu0 0.0
        %675 = vmatprep.subr.mxu0 0.0
        %676 = vmatpush1.msra.mxu0 0.0
        %677 = vmatprep.subr.mxu0 0.0
        %678 = vmatpush1.msra.mxu0 0.0
        %679 = vmatprep.subr.mxu0 0.0
        %680 = vmatpush1.msra.mxu0 0.0
        %681 = vmatprep.subr.mxu0 0.0
        %682 = vmatpush1.msra.mxu0 0.0
        %683 = vmatprep.subr.mxu0 0.0
        %684 = vmatpush1.msra.mxu0 0.0
        %685 = vmatprep.subr.mxu0 0.0
        %686 = vmatpush1.msra.mxu0 0.0
        %687 = vmatprep.subr.mxu0 0.0
        %688 = vmatpush1.msra.mxu0 0.0
        %689 = vmatprep.subr.mxu0 0.0
        %690 = vmatpush1.msra.mxu0 0.0
        %691 = vmatprep.mubr.f32.mxu0 0.0
        %692 = vmatmul.mubr.f32.gmra.mrb[0].mxu0 %v487
        %v693 = vpop.f32.mrb[0].mxu0
        %v694 = vadd.f32 0.0, %v693
        %v695 = vpop.f32.mrb[0].mxu0
        %696 = vmatprep.mubr.f32.mxu0 0.0
        %697 = vmatmul.mubr.f32.gmra.mrb[0].mxu0 %v493
        %v698 = vpop.f32.mrb[0].mxu0
        %v699 = vadd.f32 0.0, %v698
        %v700 = vpop.f32.mrb[0].mxu0
        %701 = vdwg.mxu0
        %v702 = vlaneseq
        %v703 = vshrl.u32 %v702, 7
        %v704 = vadd.s32 %v703, 8
        %v705 = vlaneseq
        %v706 = vand.u32 %v705, 127
        %vm707 = vcmp.ge.s32.totalorder %v703, %v706
        %vm708 = vcmp.ge.s32.totalorder %v704, %v706
        %v709 = vsel %vm707, %v694, 0.0
        %v710 = vsel %vm708, %v699, 0.0
        %v711 = vld [vmem:[#allocation2] sm:$0xff]
        %v712 = vld [vmem:[#allocation2 + $0x8] sm:$0xff]
        %v713 = vld [vmem:[#allocation2 + $0x10] sm:$0xff]
        %v714 = vld [vmem:[#allocation2 + $0x18] sm:$0xff]
        %v715 = vld [vmem:[#allocation2 + $0x20] sm:$0xff]
        %v716 = vld [vmem:[#allocation2 + $0x28] sm:$0xff]
        %v717 = vld [vmem:[#allocation2 + $0x30] sm:$0xff]
        %v718 = vld [vmem:[#allocation2 + $0x38] sm:$0xff]
        %v719 = vld [vmem:[#allocation2 + $0x40] sm:$0xff]
        %v720 = vld [vmem:[#allocation2 + $0x48] sm:$0xff]
        %v721 = vld [vmem:[#allocation2 + $0x50] sm:$0xff]
        %v722 = vld [vmem:[#allocation2 + $0x58] sm:$0xff]
        %v723 = vld [vmem:[#allocation2 + $0x60] sm:$0xff]
        %v724 = vld [vmem:[#allocation2 + $0x68] sm:$0xff]
        %v725 = vld [vmem:[#allocation2 + $0x70] sm:$0xff]
        %v726 = vld [vmem:[#allocation2 + $0x78] sm:$0xff]
        %727 = vmatprep.subr.mxu0 0.0
        %728 = vmatpush1.msra.mxu0 %v711
        %729 = vmatprep.subr.mxu0 0.0
        %730 = vmatpush1.msra.mxu0 %v712
        %731 = vmatprep.subr.mxu0 0.0
        %732 = vmatpush1.msra.mxu0 %v713
        %733 = vmatprep.subr.mxu0 0.0
        %734 = vmatpush1.msra.mxu0 %v714
        %735 = vmatprep.subr.mxu0 0.0
        %736 = vmatpush1.msra.mxu0 %v715
        %737 = vmatprep.subr.mxu0 0.0
        %738 = vmatpush1.msra.mxu0 %v716
        %739 = vmatprep.subr.mxu0 0.0
        %740 = vmatpush1.msra.mxu0 %v717
        %741 = vmatprep.subr.mxu0 0.0
        %742 = vmatpush1.msra.mxu0 %v718
        %743 = vmatprep.subr.mxu0 0.0
        %744 = vmatpush1.msra.mxu0 %v719
        %745 = vmatprep.subr.mxu0 0.0
        %746 = vmatpush1.msra.mxu0 %v720
        %747 = vmatprep.subr.mxu0 0.0
        %748 = vmatpush1.msra.mxu0 %v721
        %749 = vmatprep.subr.mxu0 0.0
        %750 = vmatpush1.msra.mxu0 %v722
        %751 = vmatprep.subr.mxu0 0.0
        %752 = vmatpush1.msra.mxu0 %v723
        %753 = vmatprep.subr.mxu0 0.0
        %754 = vmatpush1.msra.mxu0 %v724
        %755 = vmatprep.subr.mxu0 0.0
        %756 = vmatpush1.msra.mxu0 %v725
        %757 = vmatprep.subr.mxu0 0.0
        %758 = vmatpush1.msra.mxu0 %v726
        %759 = vmatprep.subr.mxu0 0.0
        %760 = vmatpush1.msra.mxu0 0.0
        %761 = vmatprep.subr.mxu0 0.0
        %762 = vmatpush1.msra.mxu0 0.0
        %763 = vmatprep.subr.mxu0 0.0
        %764 = vmatpush1.msra.mxu0 0.0
        %765 = vmatprep.subr.mxu0 0.0
        %766 = vmatpush1.msra.mxu0 0.0
        %767 = vmatprep.subr.mxu0 0.0
        %768 = vmatpush1.msra.mxu0 0.0
        %769 = vmatprep.subr.mxu0 0.0
        %770 = vmatpush1.msra.mxu0 0.0
        %771 = vmatprep.subr.mxu0 0.0
        %772 = vmatpush1.msra.mxu0 0.0
        %773 = vmatprep.subr.mxu0 0.0
        %774 = vmatpush1.msra.mxu0 0.0
        %775 = vmatprep.subr.mxu0 0.0
        %776 = vmatpush1.msra.mxu0 0.0
        %777 = vmatprep.subr.mxu0 0.0
        %778 = vmatpush1.msra.mxu0 0.0
        %779 = vmatprep.subr.mxu0 0.0
        %780 = vmatpush1.msra.mxu0 0.0
        %781 = vmatprep.subr.mxu0 0.0
        %782 = vmatpush1.msra.mxu0 0.0
        %783 = vmatprep.subr.mxu0 0.0
        %784 = vmatpush1.msra.mxu0 0.0
        %785 = vmatprep.subr.mxu0 0.0
        %786 = vmatpush1.msra.mxu0 0.0
        %787 = vmatprep.subr.mxu0 0.0
        %788 = vmatpush1.msra.mxu0 0.0
        %789 = vmatprep.subr.mxu0 0.0
        %790 = vmatpush1.msra.mxu0 0.0
        %791 = vmatprep.mubr.f32.mxu0 0.0
        %792 = vmatmul.mubr.f32.gmra.mrb[0].mxu0 %v487
        %v793 = vpop.f32.mrb[0].mxu0
        %v794 = vadd.f32 0.0, %v793
        %v795 = vpop.f32.mrb[0].mxu0
        %796 = vmatprep.mubr.f32.mxu0 0.0
        %797 = vmatmul.mubr.f32.gmra.mrb[0].mxu0 %v493
        %v798 = vpop.f32.mrb[0].mxu0
        %v799 = vadd.f32 0.0, %v798
        %v800 = vpop.f32.mrb[0].mxu0
        %801 = vdwg.mxu0
        %vm802 = vcmask 130048
        %v804 = vsel %vm802, %v709, 0
        %v807 = vsel %vm802, %v710, 0
        %809 = vmatprep.subr.mxu0 0.0
        %810 = vmatpush1.msra.mxu0 %v564
        %811 = vmatprep.subr.mxu0 0.0
        %812 = vmatpush1.msra.mxu0 %v569
        %813 = vmatprep.subr.mxu0 0.0
        %814 = vmatpush1.msra.mxu0 0.0
        %815 = vmatprep.subr.mxu0 0.0
        %816 = vmatpush1.msra.mxu0 0.0
        %817 = vmatprep.subr.mxu0 0.0
        %818 = vmatpush1.msra.mxu0 0.0
        %819 = vmatprep.subr.mxu0 0.0
        %820 = vmatpush1.msra.mxu0 0.0
        %821 = vmatprep.subr.mxu0 0.0
        %822 = vmatpush1.msra.mxu0 0.0
        %823 = vmatprep.subr.mxu0 0.0
        %824 = vmatpush1.msra.mxu0 0.0
        %825 = vmatprep.subr.mxu0 0.0
        %826 = vmatpush1.msra.mxu0 0.0
        %827 = vmatprep.subr.mxu0 0.0
        %828 = vmatpush1.msra.mxu0 0.0
        %829 = vmatprep.subr.mxu0 0.0
        %830 = vmatpush1.msra.mxu0 0.0
        %831 = vmatprep.subr.mxu0 0.0
        %832 = vmatpush1.msra.mxu0 0.0
        %833 = vmatprep.subr.mxu0 0.0
        %834 = vmatpush1.msra.mxu0 0.0
        %835 = vmatprep.subr.mxu0 0.0
        %836 = vmatpush1.msra.mxu0 0.0
        %837 = vmatprep.subr.mxu0 0.0
        %838 = vmatpush1.msra.mxu0 0.0
        %839 = vmatprep.subr.mxu0 0.0
        %840 = vmatpush1.msra.mxu0 0.0
        %841 = vmatprep.subr.mxu0 0.0
        %842 = vmatpush1.msra.mxu0 0.0
        %843 = vmatprep.subr.mxu0 0.0
        %844 = vmatpush1.msra.mxu0 0.0
        %845 = vmatprep.subr.mxu0 0.0
        %846 = vmatpush1.msra.mxu0 0.0
        %847 = vmatprep.subr.mxu0 0.0
        %848 = vmatpush1.msra.mxu0 0.0
        %849 = vmatprep.subr.mxu0 0.0
        %850 = vmatpush1.msra.mxu0 0.0
        %851 = vmatprep.subr.mxu0 0.0
        %852 = vmatpush1.msra.mxu0 0.0
        %853 = vmatprep.subr.mxu0 0.0
        %854 = vmatpush1.msra.mxu0 0.0
        %855 = vmatprep.subr.mxu0 0.0
        %856 = vmatpush1.msra.mxu0 0.0
        %857 = vmatprep.subr.mxu0 0.0
        %858 = vmatpush1.msra.mxu0 0.0
        %859 = vmatprep.subr.mxu0 0.0
        %860 = vmatpush1.msra.mxu0 0.0
        %861 = vmatprep.subr.mxu0 0.0
        %862 = vmatpush1.msra.mxu0 0.0
        %863 = vmatprep.subr.mxu0 0.0
        %864 = vmatpush1.msra.mxu0 0.0
        %865 = vmatprep.subr.mxu0 0.0
        %866 = vmatpush1.msra.mxu0 0.0
        %867 = vmatprep.subr.mxu0 0.0
        %868 = vmatpush1.msra.mxu0 0.0
        %869 = vmatprep.subr.mxu0 0.0
        %870 = vmatpush1.msra.mxu0 0.0
        %871 = vmatprep.subr.mxu0 0.0
        %872 = vmatpush1.msra.mxu0 0.0
        %873 = vmatprep.mubr.f32.mxu0 0.0
        %874 = vmatmul.mubr.f32.gmra.mrb[0].mxu0 %v804
        %v875 = vpop.f32.mrb[0].mxu0
        %v876 = vadd.f32 %v794, %v875
        %v877 = vpop.f32.mrb[0].mxu0
        %878 = vmatprep.mubr.f32.mxu0 0.0
        %879 = vmatmul.mubr.f32.gmra.mrb[0].mxu0 %v807
        %v880 = vpop.f32.mrb[0].mxu0
        %v881 = vadd.f32 %v799, %v880
        %v882 = vpop.f32.mrb[0].mxu0
        %883 = vdwg.mxu0
        %v885 = vsel %vm802, %v611, 0
        %v888 = vsel %vm802, %v612, 0
        %v891 = vsel %vm802, %v613, 0
        %v894 = vsel %vm802, %v614, 0
        %v897 = vsel %vm802, %v615, 0
        %v900 = vsel %vm802, %v616, 0
        %v903 = vsel %vm802, %v617, 0
        %v906 = vsel %vm802, %v618, 0
        %v909 = vsel %vm802, %v619, 0
        %v912 = vsel %vm802, %v620, 0
        %v915 = vsel %vm802, %v621, 0
        %v918 = vsel %vm802, %v622, 0
        %v921 = vsel %vm802, %v623, 0
        %v924 = vsel %vm802, %v624, 0
        %v927 = vsel %vm802, %v625, 0
        %v930 = vsel %vm802, %v626, 0
        %932 = vmatprep.subr.mxu0 0.0
        %933 = vmatpush1.msra.mxu0 %v564
        %934 = vmatprep.subr.mxu0 0.0
        %935 = vmatpush1.msra.mxu0 %v569
        %936 = vmatprep.subr.mxu0 0.0
        %937 = vmatpush1.msra.mxu0 0.0
        %938 = vmatprep.subr.mxu0 0.0
        %939 = vmatpush1.msra.mxu0 0.0
        %940 = vmatprep.subr.mxu0 0.0
        %941 = vmatpush1.msra.mxu0 0.0
        %942 = vmatprep.subr.mxu0 0.0
        %943 = vmatpush1.msra.mxu0 0.0
        %944 = vmatprep.subr.mxu0 0.0
        %945 = vmatpush1.msra.mxu0 0.0
        %946 = vmatprep.subr.mxu0 0.0
        %947 = vmatpush1.msra.mxu0 0.0
        %948 = vmatprep.subr.mxu0 0.0
        %949 = vmatpush1.msra.mxu0 0.0
        %950 = vmatprep.subr.mxu0 0.0
        %951 = vmatpush1.msra.mxu0 0.0
        %952 = vmatprep.subr.mxu0 0.0
        %953 = vmatpush1.msra.mxu0 0.0
        %954 = vmatprep.subr.mxu0 0.0
        %955 = vmatpush1.msra.mxu0 0.0
        %956 = vmatprep.subr.mxu0 0.0
        %957 = vmatpush1.msra.mxu0 0.0
        %958 = vmatprep.subr.mxu0 0.0
        %959 = vmatpush1.msra.mxu0 0.0
        %960 = vmatprep.subr.mxu0 0.0
        %961 = vmatpush1.msra.mxu0 0.0
        %962 = vmatprep.subr.mxu0 0.0
        %963 = vmatpush1.msra.mxu0 0.0
        %964 = vmatprep.subr.mxu0 0.0
        %965 = vmatpush1.msra.mxu0 0.0
        %966 = vmatprep.subr.mxu0 0.0
        %967 = vmatpush1.msra.mxu0 0.0
        %968 = vmatprep.subr.mxu0 0.0
        %969 = vmatpush1.msra.mxu0 0.0
        %970 = vmatprep.subr.mxu0 0.0
        %971 = vmatpush1.msra.mxu0 0.0
        %972 = vmatprep.subr.mxu0 0.0
        %973 = vmatpush1.msra.mxu0 0.0
        %974 = vmatprep.subr.mxu0 0.0
        %975 = vmatpush1.msra.mxu0 0.0
        %976 = vmatprep.subr.mxu0 0.0
        %977 = vmatpush1.msra.mxu0 0.0
        %978 = vmatprep.subr.mxu0 0.0
        %979 = vmatpush1.msra.mxu0 0.0
        %980 = vmatprep.subr.mxu0 0.0
        %981 = vmatpush1.msra.mxu0 0.0
        %982 = vmatprep.subr.mxu0 0.0
        %983 = vmatpush1.msra.mxu0 0.0
        %984 = vmatprep.subr.mxu0 0.0
        %985 = vmatpush1.msra.mxu0 0.0
        %986 = vmatprep.subr.mxu0 0.0
        %987 = vmatpush1.msra.mxu0 0.0
        %988 = vmatprep.subr.mxu0 0.0
        %989 = vmatpush1.msra.mxu0 0.0
        %990 = vmatprep.subr.mxu0 0.0
        %991 = vmatpush1.msra.mxu0 0.0
        %992 = vmatprep.subr.mxu0 0.0
        %993 = vmatpush1.msra.mxu0 0.0
        %994 = vmatprep.subr.mxu0 0.0
        %995 = vmatpush1.msra.mxu0 0.0
        %996 = vmatprep.mubr.f32.mxu0 0.0
        %997 = vmatmul.mubr.f32.gmra.mrb[0].mxu0 %v885
        %v998 = vpop.f32.mrb[0].mxu0
        %v999 = vadd.f32 0.0, %v998
        %v1000 = vpop.f32.mrb[0].mxu0
        %1001 = vmatprep.mubr.f32.mxu0 0.0
        %1002 = vmatmul.mubr.f32.gmra.mrb[0].mxu0 %v888
        %v1003 = vpop.f32.mrb[0].mxu0
        %v1004 = vadd.f32 0.0, %v1003
        %v1005 = vpop.f32.mrb[0].mxu0
        %1006 = vmatprep.mubr.f32.mxu0 0.0
        %1007 = vmatmul.mubr.f32.gmra.mrb[0].mxu0 %v891
        %v1008 = vpop.f32.mrb[0].mxu0
        %v1009 = vadd.f32 0.0, %v1008
        %v1010 = vpop.f32.mrb[0].mxu0
        %1011 = vmatprep.mubr.f32.mxu0 0.0
        %1012 = vmatmul.mubr.f32.gmra.mrb[0].mxu0 %v894
        %v1013 = vpop.f32.mrb[0].mxu0
        %v1014 = vadd.f32 0.0, %v1013
        %v1015 = vpop.f32.mrb[0].mxu0
        %1016 = vmatprep.mubr.f32.mxu0 0.0
        %1017 = vmatmul.mubr.f32.gmra.mrb[0].mxu0 %v897
        %v1018 = vpop.f32.mrb[0].mxu0
        %v1019 = vadd.f32 0.0, %v1018
        %v1020 = vpop.f32.mrb[0].mxu0
        %1021 = vmatprep.mubr.f32.mxu0 0.0
        %1022 = vmatmul.mubr.f32.gmra.mrb[0].mxu0 %v900
        %v1023 = vpop.f32.mrb[0].mxu0
        %v1024 = vadd.f32 0.0, %v1023
        %v1025 = vpop.f32.mrb[0].mxu0
        %1026 = vmatprep.mubr.f32.mxu0 0.0
        %1027 = vmatmul.mubr.f32.gmra.mrb[0].mxu0 %v903
        %v1028 = vpop.f32.mrb[0].mxu0
        %v1029 = vadd.f32 0.0, %v1028
        %v1030 = vpop.f32.mrb[0].mxu0
        %1031 = vmatprep.mubr.f32.mxu0 0.0
        %1032 = vmatmul.mubr.f32.gmra.mrb[0].mxu0 %v906
        %v1033 = vpop.f32.mrb[0].mxu0
        %v1034 = vadd.f32 0.0, %v1033
        %v1035 = vpop.f32.mrb[0].mxu0
        %1036 = vmatprep.mubr.f32.mxu0 0.0
        %1037 = vmatmul.mubr.f32.gmra.mrb[0].mxu0 %v909
        %v1038 = vpop.f32.mrb[0].mxu0
        %v1039 = vadd.f32 0.0, %v1038
        %v1040 = vpop.f32.mrb[0].mxu0
        %1041 = vmatprep.mubr.f32.mxu0 0.0
        %1042 = vmatmul.mubr.f32.gmra.mrb[0].mxu0 %v912
        %v1043 = vpop.f32.mrb[0].mxu0
        %v1044 = vadd.f32 0.0, %v1043
        %v1045 = vpop.f32.mrb[0].mxu0
        %1046 = vmatprep.mubr.f32.mxu0 0.0
        %1047 = vmatmul.mubr.f32.gmra.mrb[0].mxu0 %v915
        %v1048 = vpop.f32.mrb[0].mxu0
        %v1049 = vadd.f32 0.0, %v1048
        %v1050 = vpop.f32.mrb[0].mxu0
        %1051 = vmatprep.mubr.f32.mxu0 0.0
        %1052 = vmatmul.mubr.f32.gmra.mrb[0].mxu0 %v918
        %v1053 = vpop.f32.mrb[0].mxu0
        %v1054 = vadd.f32 0.0, %v1053
        %v1055 = vpop.f32.mrb[0].mxu0
        %1056 = vmatprep.mubr.f32.mxu0 0.0
        %1057 = vmatmul.mubr.f32.gmra.mrb[0].mxu0 %v921
        %v1058 = vpop.f32.mrb[0].mxu0
        %v1059 = vadd.f32 0.0, %v1058
        %v1060 = vpop.f32.mrb[0].mxu0
        %1061 = vmatprep.mubr.f32.mxu0 0.0
        %1062 = vmatmul.mubr.f32.gmra.mrb[0].mxu0 %v924
        %v1063 = vpop.f32.mrb[0].mxu0
        %v1064 = vadd.f32 0.0, %v1063
        %v1065 = vpop.f32.mrb[0].mxu0
        %1066 = vmatprep.mubr.f32.mxu0 0.0
        %1067 = vmatmul.mubr.f32.gmra.mrb[0].mxu0 %v927
        %v1068 = vpop.f32.mrb[0].mxu0
        %v1069 = vadd.f32 0.0, %v1068
        %v1070 = vpop.f32.mrb[0].mxu0
        %1071 = vmatprep.mubr.f32.mxu0 0.0
        %1072 = vmatmul.mubr.f32.gmra.mrb[0].mxu0 %v930
        %v1073 = vpop.f32.mrb[0].mxu0
        %v1074 = vadd.f32 0.0, %v1073
        %v1075 = vpop.f32.mrb[0].mxu0
        %1076 = vdwg.mxu0
        %v1077 = vadd.f32 %v711, %v999
        %v1078 = vadd.f32 %v712, %v1004
        %v1079 = vadd.f32 %v713, %v1009
        %v1080 = vadd.f32 %v714, %v1014
        %v1081 = vadd.f32 %v715, %v1019
        %v1082 = vadd.f32 %v716, %v1024
        %v1083 = vadd.f32 %v717, %v1029
        %v1084 = vadd.f32 %v718, %v1034
        %v1085 = vadd.f32 %v719, %v1039
        %v1086 = vadd.f32 %v720, %v1044
        %v1087 = vadd.f32 %v721, %v1049
        %v1088 = vadd.f32 %v722, %v1054
        %v1089 = vadd.f32 %v723, %v1059
        %v1090 = vadd.f32 %v724, %v1064
        %v1091 = vadd.f32 %v725, %v1069
        %v1092 = vadd.f32 %v726, %v1074
        %1093 = vst [vmem:[#allocation2] sm:$0xff] %v1077
        %1094 = vst [vmem:[#allocation2 + $0x8] sm:$0xff] %v1078
        %1095 = vst [vmem:[#allocation2 + $0x10] sm:$0xff] %v1079
        %1096 = vst [vmem:[#allocation2 + $0x18] sm:$0xff] %v1080
        %1097 = vst [vmem:[#allocation2 + $0x20] sm:$0xff] %v1081
        %1098 = vst [vmem:[#allocation2 + $0x28] sm:$0xff] %v1082
        %1099 = vst [vmem:[#allocation2 + $0x30] sm:$0xff] %v1083
        %1100 = vst [vmem:[#allocation2 + $0x38] sm:$0xff] %v1084
        %1101 = vst [vmem:[#allocation2 + $0x40] sm:$0xff] %v1085
        %1102 = vst [vmem:[#allocation2 + $0x48] sm:$0xff] %v1086
        %1103 = vst [vmem:[#allocation2 + $0x50] sm:$0xff] %v1087
        %1104 = vst [vmem:[#allocation2 + $0x58] sm:$0xff] %v1088
        %1105 = vst [vmem:[#allocation2 + $0x60] sm:$0xff] %v1089
        %1106 = vst [vmem:[#allocation2 + $0x68] sm:$0xff] %v1090
        %1107 = vst [vmem:[#allocation2 + $0x70] sm:$0xff] %v1091
        %1108 = vst [vmem:[#allocation2 + $0x78] sm:$0xff] %v1092
        %v1109 = vld [vmem:[#allocation8] sm:$0xff]
        %v1110 = vld [vmem:[#allocation8 + $0x8] sm:$0xff]
        %v1111 = vld [vmem:[#allocation8 + $0x10] sm:$0xff]
        %v1112 = vld [vmem:[#allocation8 + $0x18] sm:$0xff]
        %v1113 = vld [vmem:[#allocation8 + $0x20] sm:$0xff]
        %v1114 = vld [vmem:[#allocation8 + $0x28] sm:$0xff]
        %v1115 = vld [vmem:[#allocation8 + $0x30] sm:$0xff]
        %v1116 = vld [vmem:[#allocation8 + $0x38] sm:$0xff]
        %v1117 = vld [vmem:[#allocation8 + $0x40] sm:$0xff]
        %v1118 = vld [vmem:[#allocation8 + $0x48] sm:$0xff]
        %v1119 = vld [vmem:[#allocation8 + $0x50] sm:$0xff]
        %v1120 = vld [vmem:[#allocation8 + $0x58] sm:$0xff]
        %v1121 = vld [vmem:[#allocation8 + $0x60] sm:$0xff]
        %v1122 = vld [vmem:[#allocation8 + $0x68] sm:$0xff]
        %v1123 = vld [vmem:[#allocation8 + $0x70] sm:$0xff]
        %v1124 = vld [vmem:[#allocation8 + $0x78] sm:$0xff]
        %v1125 = vld [vmem:[%s4] sm:$0x1]
        %v1127 = vlaneseq
        %v1128 = vshrl.u32 %v1127, 7
        %v1129 = vsub.s32 0, %v1128
        %v1130 = vrot.slane %v1125, %v1129
        %1132 = vmatprep.subr.mxu0 0.0
        %1133 = vmatpush1.msra.mxu0 %v1109
        %1134 = vmatprep.subr.mxu0 0.0
        %1135 = vmatpush1.msra.mxu0 %v1110
        %1136 = vmatprep.subr.mxu0 0.0
        %1137 = vmatpush1.msra.mxu0 %v1111
        %1138 = vmatprep.subr.mxu0 0.0
        %1139 = vmatpush1.msra.mxu0 %v1112
        %1140 = vmatprep.subr.mxu0 0.0
        %1141 = vmatpush1.msra.mxu0 %v1113
        %1142 = vmatprep.subr.mxu0 0.0
        %1143 = vmatpush1.msra.mxu0 %v1114
        %1144 = vmatprep.subr.mxu0 0.0
        %1145 = vmatpush1.msra.mxu0 %v1115
        %1146 = vmatprep.subr.mxu0 0.0
        %1147 = vmatpush1.msra.mxu0 %v1116
        %1148 = vmatprep.subr.mxu0 0.0
        %1149 = vmatpush1.msra.mxu0 %v1117
        %1150 = vmatprep.subr.mxu0 0.0
        %1151 = vmatpush1.msra.mxu0 %v1118
        %1152 = vmatprep.subr.mxu0 0.0
        %1153 = vmatpush1.msra.mxu0 %v1119
        %1154 = vmatprep.subr.mxu0 0.0
        %1155 = vmatpush1.msra.mxu0 %v1120
        %1156 = vmatprep.subr.mxu0 0.0
        %1157 = vmatpush1.msra.mxu0 %v1121
        %1158 = vmatprep.subr.mxu0 0.0
        %1159 = vmatpush1.msra.mxu0 %v1122
        %1160 = vmatprep.subr.mxu0 0.0
        %1161 = vmatpush1.msra.mxu0 %v1123
        %1162 = vmatprep.subr.mxu0 0.0
        %1163 = vmatpush1.msra.mxu0 %v1124
        %1164 = vmatprep.subr.mxu0 0.0
        %1165 = vmatpush1.msra.mxu0 0.0
        %1166 = vmatprep.subr.mxu0 0.0
        %1167 = vmatpush1.msra.mxu0 0.0
        %1168 = vmatprep.subr.mxu0 0.0
        %1169 = vmatpush1.msra.mxu0 0.0
        %1170 = vmatprep.subr.mxu0 0.0
        %1171 = vmatpush1.msra.mxu0 0.0
        %1172 = vmatprep.subr.mxu0 0.0
        %1173 = vmatpush1.msra.mxu0 0.0
        %1174 = vmatprep.subr.mxu0 0.0
        %1175 = vmatpush1.msra.mxu0 0.0
        %1176 = vmatprep.subr.mxu0 0.0
        %1177 = vmatpush1.msra.mxu0 0.0
        %1178 = vmatprep.subr.mxu0 0.0
        %1179 = vmatpush1.msra.mxu0 0.0
        %1180 = vmatprep.subr.mxu0 0.0
        %1181 = vmatpush1.msra.mxu0 0.0
        %1182 = vmatprep.subr.mxu0 0.0
        %1183 = vmatpush1.msra.mxu0 0.0
        %1184 = vmatprep.subr.mxu0 0.0
        %1185 = vmatpush1.msra.mxu0 0.0
        %1186 = vmatprep.subr.mxu0 0.0
        %1187 = vmatpush1.msra.mxu0 0.0
        %1188 = vmatprep.subr.mxu0 0.0
        %1189 = vmatpush1.msra.mxu0 0.0
        %1190 = vmatprep.subr.mxu0 0.0
        %1191 = vmatpush1.msra.mxu0 0.0
        %1192 = vmatprep.subr.mxu0 0.0
        %1193 = vmatpush1.msra.mxu0 0.0
        %1194 = vmatprep.subr.mxu0 0.0
        %1195 = vmatpush1.msra.mxu0 0.0
        %1196 = vmatprep.mubr.f32.mxu0 0.0
        %1197 = vmatmul.mubr.f32.gmra.mrb[0].mxu0 %v876
        %v1198 = vpop.f32.mrb[0].mxu0
        %v1199 = vadd.f32 %v1130, %v1198
        %v1200 = vpop.f32.mrb[0].mxu0
        %1201 = vmatprep.mubr.f32.mxu0 0.0
        %1202 = vmatmul.mubr.f32.gmra.mrb[0].mxu0 %v881
        %v1203 = vpop.f32.mrb[0].mxu0
        %v1204 = vadd.f32 %v1130, %v1203
        %v1205 = vpop.f32.mrb[0].mxu0
        %1206 = vdwg.mxu0
        %1207 = vst [vmem:[%s327] sm:$0xff] %v1199
        %1208 = vst [vmem:[%s327 + $0x8] sm:$0xff] %v1204
        %s1209 = sand.u32 %s184, 1
        %s1210 = scalar_lea.sflag [#allocation5], %s1209
        %s1211 = sand.u32 %s184, 1
        %s1212 = smul.addr %s1211, 16
        %s1213 = scalar_lea.vmem [#allocation9], %s1212
        // Predicated region
        $region61: #{tpu_custom_call.1} parent=43 // pred_check
          %p1214 = pneg %p194
        $region62: #{tpu_custom_call.1} parent=43 // pred_check_branch
          %1216 = sbr.rel (%p1214) target = $region64
        $region63: #{tpu_custom_call.1} parent=43 // pred_region
          %s1217 = smul.u32 2, %s29
          %s1219 = ssub.s32 256, 256
          %1220 = vsyncadd %s1210, %s1219
          %s1221 = smul.addr %s28, 2
          %s1222 = sadd.s32 %s1217, %s1221
          %s1223 = smul.addr %s1222, 128
          %s1224 = scalar_lea.hbm %s6, %s1223
          %s1225 = sshll.u32 %s1213, 4
          %s1226 = int_to_ptr.vmem [resolvable:$true] %s1225
          %1231 = dma.vmem_to_hbm [thread:$0]  %s1226, 256, %s1224, %s1210, 128, 128, 8
        $region64: #{tpu_custom_call.1} parent=43 // pred_fallthru
          _
      $region44: #{tpu_custom_call.1} parent=5 // pred_fallthru
        _
      %p1232 = scmp.le.s32.totalorder 2, %s19
      // Predicated region
      $region65: #{tpu_custom_call.1} parent=5 // pred_check
        %p1233 = pneg %p1232
      $region66: #{tpu_custom_call.1} parent=5 // pred_check_branch
        %1235 = sbr.rel (%p1233) target = $region68
      $region67: #{tpu_custom_call.1} parent=5 // pred_region
        %s1236 = ssub.s32 %s19, 2
        // Predicated region
        $region69: #{tpu_custom_call.1} parent=67 // pred_check
          %p1237 = pneg %p200
        $region70: #{tpu_custom_call.1} parent=67 // pred_check_branch
          %1239 = sbr.rel (%p1237) target = $region72
        $region71: #{tpu_custom_call.1} parent=67 // pred_region
          %s1240 = sand.u32 %s185, 1
          %s1241 = scalar_lea.sflag [#allocation5], %s1240
          %s1242 = sand.u32 %s185, 1
          %s1243 = smul.addr %s1242, 16
          %s1244 = scalar_lea.vmem [#allocation9], %s1243
          %1245 = dma.done %s1241, 256
        $region72: #{tpu_custom_call.1} parent=67 // pred_fallthru
          _
      $region68: #{tpu_custom_call.1} parent=5 // pred_fallthru
        _
    $region6: #{tpu_custom_call.1} parent=1 // loop_footer
      %s23 = sadd.s32 1, %s19
    $region7: #{tpu_custom_call.1} parent=1 // loop_footer_branch
      %18 = sbr.rel target = $region3
    $region8: #{tpu_custom_call.1} parent=1 // loop_exit
      _
    %1246 = vsyncpa [#allocation4], 1
    %s1247 = scalar_lea.sflag [#allocation4], 1
    %1248 = vsyncpa %s1247, 1
    %1249 = vsyncpa [#allocation7], 1
    %1250 = vsyncpa [#allocation5], 1
    %s1251 = scalar_lea.sflag [#allocation5], 1
    %1252 = vsyncpa %s1251, 1

</llo_original>
